<compile_context>
chip_gen: v7x
topology: tpu7x:2x2x1
jax: 0.10.0
libtpu: 0.0.40
codegen_flags: <defaults>
</compile_context>

<pallas_src>
import functools

import jax
import jax.numpy as jnp
from jax import lax
from jax.experimental import pallas as pl
from jax.experimental.pallas import tpu as pltpu

_MASK_VALUE = -1e30  # finite stand-in for -inf when masking self / padded columns
_LANES = 128         # lane width; granularity of the partitioned running stats


def _nt_xent_kernel(q_ref, k_ref, *args, block_q, block_k, exp_dtype, has_pad):
    """One (row_tile, col_tile) step of the lane-partitioned online-LSE forward."""
    if has_pad:
        bias_ref, out_ref, m_sc, l_sc = args
    else:
        bias_ref = None
        out_ref, m_sc, l_sc = args

    i = pl.program_id(0)  # row tile (parallel axis)
    j = pl.program_id(1)  # col tile (reduction axis, last)

    @pl.when(j == 0)
    def _init():
        m_sc[...] = jnp.full((block_q, _LANES), -jnp.inf, dtype=jnp.float32)
        l_sc[...] = jnp.zeros((block_q, _LANES), dtype=jnp.float32)

    q = q_ref[...]  # (block_q, D): normalized rows, pre-scaled by 1/temperature
    k = k_ref[...]  # (block_k, D): normalized rows

    # Score tile on the MXU; contract over D without materializing k.T.
    s = lax.dot_general(
        q, k, dimension_numbers=(((1,), (1,)), ((), ())),
        preferred_element_type=jnp.float32,
    )  # (block_q, block_k), already == sim / temperature

    if has_pad:
        # Mask padded key columns via a streamed additive bias row (0 / -1e30).
        s = s + bias_ref[...]                                 # (1, block_k) broadcast

    row_start = i * block_q
    col_start = j * block_k
    n_groups = block_k // _LANES

    def _online_update(scores):
        """Lane-partitioned online logsumexp: lane c accumulates cols ≡ c (mod 128)."""
        m_prev = m_sc[...]                                     # (block_q, 128)
        # Per-lane max across the tile's lane groups: pure VPU, no cross-lane XLU.
        m_tile = scores[:, 0:_LANES]
        for g in range(1, n_groups):
            m_tile = jnp.maximum(m_tile, scores[:, g * _LANES:(g + 1) * _LANES])
        m_new = jnp.maximum(m_prev, m_tile)
        acc = l_sc[...] * jnp.exp(m_prev - m_new)              # rescale stays in f32
        for g in range(n_groups):
            d = scores[:, g * _LANES:(g + 1) * _LANES] - m_new
            # exp in bf16 on v6e/v7x (EUP bf16-native), f32 accumulation.
            acc = acc + jnp.exp(d.astype(exp_dtype)).astype(jnp.float32)
        l_sc[...] = acc
        m_sc[...] = m_new

    # Exclude j == i only on tiles that actually intersect the diagonal.
    is_diag = jnp.logical_and(row_start < col_start + block_k,
                              col_start < row_start + block_q)

    @pl.when(is_diag)
    def _diag_tile():
        rid = row_start + lax.broadcasted_iota(jnp.int32, (block_q, block_k), 0)
        cid = col_start + lax.broadcasted_iota(jnp.int32, (block_q, block_k), 1)
        _online_update(jnp.where(rid == cid, _MASK_VALUE, s))

    @pl.when(jnp.logical_not(is_diag))
    def _off_diag_tile():
        _online_update(s)

    @pl.when(j == pl.num_programs(1) - 1)
    def _finalize():
        # Combine the 128 per-lane running stats: one cross-lane reduce per row tile.
        m = m_sc[...]                                          # (block_q, 128)
        l = l_sc[...]
        m_row = jnp.max(m, axis=-1, keepdims=True)             # (block_q, 1)
        l_row = jnp.sum(jnp.exp(m - m_row) * l, axis=-1, keepdims=True)
        out_ref[...] = m_row + jnp.log(l_row)                  # logsumexp over j != i


def _round_up(x, m):
    return -(-x // m) * m


def _pick_tile(limit, n, align):
    """Largest multiple of `align` that divides `n` and is <= max(limit, align)."""
    t = min(int(limit), int(n))
    t -= t % align
    t = max(t, align)
    while t > align and n % t:
        t -= align
    if n % t:
        raise ValueError(f"cannot tile extent {n} with alignment {align}")
    return t


def nt_xent(zz, temperature=0.07, *, block_q=256, block_k=512,
            compute_dtype=jnp.bfloat16, exp_dtype=None, key_buffers=2):
    """NT-Xent forward. zz: (batch, 2, dim) with zz[:,0]=z_i, zz[:,1]=z_j → scalar loss."""
    B, two, D = zz.shape
    assert two == 2
    N = 2 * B

    # --- O(N*D) prework in plain JAX (fused by XLA into a single pass over zz) ---
    z32 = zz.astype(jnp.float32)                                       # (B, 2, D)
    inv_norm = lax.rsqrt(jnp.maximum(jnp.sum(z32 * z32, axis=-1, keepdims=True), 1e-8))
    zn_b2d = z32 * inv_norm
    inv_t = jnp.float32(1.0 / float(temperature))
    # Positive logit hoisted out of the kernel epilogue (both halves share it).
    pos = jnp.sum(zn_b2d[:, 0] * zn_b2d[:, 1], axis=-1) * inv_t        # (B,), f32

    # --- pad B up to a multiple of 128 so tiles stay MXU / vreg aligned ---------
    B_pad = _round_up(B, _LANES)
    n_pad = B_pad - B
    if n_pad:
        zn_b2d = jnp.pad(zn_b2d, ((0, n_pad), (0, 0), (0, 0)))        # zero rows
    N_pad = 2 * B_pad

    # torch.cat((z_i, z_j)) layout (padding appended to each half).
    zn = jnp.transpose(zn_b2d, (1, 0, 2)).reshape(N_pad, D)
    zq = (zn * inv_t).astype(compute_dtype)    # 1/T folded into the MXU row operand
    zk = zn.astype(compute_dtype)              # streamed key rows

    # --- tiling ------------------------------------------------------------------
    bq_align = 128 if (block_q >= 128 and B_pad % 128 == 0) else 8
    bq = _pick_tile(block_q, B_pad, bq_align)          # divides B_pad
    bk = _pick_tile(max(block_k, _LANES), N_pad, _LANES)
    assert bk % _LANES == 0
    grid = (N_pad // bq, N_pad // bk)

    if exp_dtype is None:
        # bf16 exp only where the EUP is bf16-native (v6e/v7x) and the MXU has slack.
        kind = ""
        try:
            kind = jax.devices()[0].device_kind.lower()
        except Exception:
            pass
        old_gen = any(t in kind for t in ("v2", "v3", "v4", "v5"))
        use_bf16 = (jnp.dtype(compute_dtype) == jnp.dtype(jnp.bfloat16)
                    and D <= 512 and not old_gen)
        exp_dtype = jnp.bfloat16 if use_bf16 else jnp.float32

    kernel = functools.partial(_nt_xent_kernel, block_q=bq, block_k=bk,
                               exp_dtype=exp_dtype, has_pad=bool(n_pad))

    key_spec_kwargs = {}
    if key_buffers != 2:
        # v5e: deepen the key-stream pipeline if the per-step key DMA is exposed.
        key_spec_kwargs["pipeline_mode"] = pl.Buffered(key_buffers)

    in_specs = [
        pl.BlockSpec((bq, D), lambda i, j: (i, 0)),                        # query rows (×1/T)
        pl.BlockSpec((bk, D), lambda i, j: (j, 0), **key_spec_kwargs),     # streamed key rows
    ]
    operands = [zq, zk]
    if n_pad:
        half_bias = jnp.where(jnp.arange(B_pad) < B, 0.0, _MASK_VALUE).astype(jnp.float32)
        col_bias = jnp.concatenate([half_bias, half_bias]).reshape(1, N_pad)
        in_specs.append(pl.BlockSpec((1, bk), lambda i, j: (0, j)))
        operands.append(col_bias)

    # VMEM limit derived from the actual tile footprint (v7x has 64 MiB physical).
    itemsize = jnp.dtype(compute_dtype).itemsize
    vmem_bytes = (2 * bq * D * itemsize        # double-buffered query tile
                  + 2 * bk * D * itemsize      # double-buffered key tile
                  + (2 * bk * 4 if n_pad else 0)   # column-mask bias row
                  + 2 * bq * 4                 # per-row output
                  + 2 * bq * _LANES * 4        # running (m, l) scratch
                  + 6 * bq * bk * 4)           # f32 score tile + temporaries (generous)
    vmem_limit = int(vmem_bytes * 1.5) + (4 << 20)
    vmem_limit = max(16 << 20, min(vmem_limit, 112 << 20))

    per_row = pl.pallas_call(
        kernel,
        out_shape=jax.ShapeDtypeStruct((N_pad, 1), jnp.float32),
        grid_spec=pltpu.PrefetchScalarGridSpec(
            num_scalar_prefetch=0,
            grid=grid,
            in_specs=in_specs,
            out_specs=pl.BlockSpec((bq, 1), lambda i, j: (i, 0)),
            scratch_shapes=[pltpu.VMEM((bq, _LANES), jnp.float32),   # running max  m
                            pltpu.VMEM((bq, _LANES), jnp.float32)],  # running sum  l
        ),
        compiler_params=pltpu.CompilerParams(
            dimension_semantics=("parallel", "arbitrary"),
            vmem_limit_bytes=vmem_limit,
        ),
    )(*operands)

    # (lse - pos) summed over the 2B real rows only; both halves share pos[b].
    lse = per_row.reshape(2, B_pad)[:, :B]                             # (2, B)
    return jnp.sum(lse - pos[None, :]) / jnp.float32(N)


def _nt_xent_reference(zz, temperature=0.07):
    """Pure-JAX reference mirroring the PyTorch forward (world_size == 1)."""
    B, _, D = zz.shape
    N = 2 * B
    z = jnp.concatenate([zz[:, 0], zz[:, 1]], axis=0).astype(jnp.float32)
    dots = z @ z.T
    norms = jnp.linalg.norm(z, axis=-1, keepdims=True)
    sim = dots / jnp.maximum(norms * norms.T, 1e-8) / temperature
    row = jnp.arange(N)[:, None]
    col = jnp.arange(N)[None, :]
    masked = jnp.where(row == col, -jnp.inf, sim)
    lse = jax.scipy.special.logsumexp(masked, axis=-1)
    pos = sim[jnp.arange(N), (jnp.arange(N) + B) % N]
    return jnp.sum(lse - pos) / N


if __name__ == "__main__":
    key = jax.random.PRNGKey(0)

    # --- batch not a multiple of 128: exercises the padding / column-mask path ---
    batch, dim = 64, 128
    zz = jax.random.normal(key, (batch, 2, dim), dtype=jnp.float32)
    ref = _nt_xent_reference(zz, temperature=0.07)

    # 1) defaults: bf16 MXU operands, f32 accumulation, bf16 exp on v6e/v7x.
    loss = jax.block_until_ready(nt_xent(zz, temperature=0.07))
    assert jnp.allclose(loss, ref, rtol=3e-2, atol=3e-2), (loss, ref)

    # 2) full f32 path: tight check of the lane-partitioned online LSE + padding.
    loss_f32 = jax.block_until_ready(
        nt_xent(zz, temperature=0.07, compute_dtype=jnp.float32))
    assert jnp.allclose(loss_f32, ref, rtol=1e-4, atol=1e-4), (loss_f32, ref)

    # 3) small tiles (f32): multiple row/col tiles, diag-only masking, col-mask bias.
    loss_tiled = jax.block_until_ready(
        nt_xent(zz, temperature=0.07, block_q=32, block_k=128,
                compute_dtype=jnp.float32))
    assert jnp.allclose(loss_tiled, ref, rtol=1e-4, atol=1e-4), (loss_tiled, ref)

    # --- batch already a multiple of 128: exercises the no-padding kernel variant ---
    zz2 = jax.random.normal(jax.random.PRNGKey(1), (128, 2, 128), dtype=jnp.float32)
    ref2 = _nt_xent_reference(zz2, temperature=0.07)
    loss2 = jax.block_until_ready(nt_xent(zz2, temperature=0.07))
    assert jnp.allclose(loss2, ref2, rtol=3e-2, atol=3e-2), (loss2, ref2)

    print("KERNEL_OK")
</pallas_src>

<mosaic_0001>
module attributes {stable_mosaic.version = 11 : i64} {
  func.func @_nt_xent_kernel(%arg0: i32, %arg1: i32, %arg2: memref<128x128xbf16, #tpu.memory_space<vmem>>, %arg3: memref<256x128xbf16, #tpu.memory_space<vmem>>, %arg4: memref<1x256xf32, #tpu.memory_space<vmem>>, %arg5: memref<128x1xf32, #tpu.memory_space<vmem>>, %arg6: memref<128x128xf32, #tpu.memory_space<vmem>>, %arg7: memref<128x128xf32, #tpu.memory_space<vmem>>) attributes {dimension_semantics = [#tpu.dimension_semantics<parallel>, #tpu.dimension_semantics<arbitrary>], iteration_bounds = array<i64: 2, 1>, scalar_prefetch = 0 : i64, scratch_operands = 2 : i64, tpu.core_type = #tpu.core_type<tc>, window_params = [{transform_indices = @transform_0, window_bounds = array<i64: 128, 128>}, {transform_indices = @transform_1, window_bounds = array<i64: 256, 128>}, {transform_indices = @transform_2, window_bounds = array<i64: 1, 256>}, {transform_indices = @transform_3, window_bounds = array<i64: 128, 1>}]} {
    %c0_i32 = arith.constant 0 : i32
    %0 = arith.cmpi eq, %arg1, %c0_i32 : i32
    %1 = arith.extui %0 : i1 to i32
    %c0_i32_0 = arith.constant 0 : i32
    %2 = arith.cmpi ne, %1, %c0_i32_0 : i32
    scf.if %2 {
      %cst_12 = arith.constant 0xFF800000 : f32
      %24 = vector.broadcast %cst_12 : f32 to vector<128x128xf32>
      %c0_13 = arith.constant 0 : index
      %c0_14 = arith.constant 0 : index
      %25 = vector.load %arg6[%c0_13, %c0_14] : memref<128x128xf32, #tpu.memory_space<vmem>>, vector<128x128xf32>
      tpu.vector_store %arg6[%c0_13, %c0_14], %24 {strides = array<i32>} : memref<128x128xf32, #tpu.memory_space<vmem>>, vector<128x128xf32>,
      %cst_15 = arith.constant 0.000000e+00 : f32
      %26 = vector.broadcast %cst_15 : f32 to vector<128x128xf32>
      %c0_16 = arith.constant 0 : index
      %c0_17 = arith.constant 0 : index
      %27 = vector.load %arg7[%c0_16, %c0_17] : memref<128x128xf32, #tpu.memory_space<vmem>>, vector<128x128xf32>
      tpu.vector_store %arg7[%c0_16, %c0_17], %26 {strides = array<i32>} : memref<128x128xf32, #tpu.memory_space<vmem>>, vector<128x128xf32>,
    } else {
    }
    %c0 = arith.constant 0 : index
    %c0_1 = arith.constant 0 : index
    %3 = vector.load %arg2[%c0, %c0_1] : memref<128x128xbf16, #tpu.memory_space<vmem>>, vector<128x128xbf16>
    %c0_2 = arith.constant 0 : index
    %c0_3 = arith.constant 0 : index
    %4 = vector.load %arg3[%c0_2, %c0_3] : memref<256x128xbf16, #tpu.memory_space<vmem>>, vector<256x128xbf16>
    %cst = arith.constant dense<0.000000e+00> : vector<128x256xf32>
    %5 = tpu.matmul %3, %4, %cst {dimension_numbers = #tpu.dot_dimension_numbers<[1], [1], [0], [0], [0, 0, 1, 0], [], []>} : vector<128x128xbf16>, vector<256x128xbf16>, vector<128x256xf32> -> vector<128x256xf32>
    %c0_4 = arith.constant 0 : index
    %c0_5 = arith.constant 0 : index
    %6 = vector.load %arg4[%c0_4, %c0_5] : memref<1x256xf32, #tpu.memory_space<vmem>>, vector<1x256xf32>
    %7 = vector.broadcast %6 : vector<1x256xf32> to vector<128x256xf32>
    %8 = arith.addf %5, %7 : vector<128x256xf32>
    %c128_i32 = arith.constant 128 : i32
    %9 = arith.muli %arg0, %c128_i32 : i32
    %c256_i32 = arith.constant 256 : i32
    %10 = arith.muli %arg1, %c256_i32 : i32
    %c256_i32_6 = arith.constant 256 : i32
    %11 = arith.addi %10, %c256_i32_6 : i32
    %12 = arith.cmpi slt, %9, %11 : i32
    %c128_i32_7 = arith.constant 128 : i32
    %13 = arith.addi %9, %c128_i32_7 : i32
    %14 = arith.cmpi slt, %10, %13 : i32
    %15 = arith.andi %12, %14 : i1
    %16 = arith.extui %15 : i1 to i32
    %c0_i32_8 = arith.constant 0 : i32
    %17 = arith.cmpi ne, %16, %c0_i32_8 : i32
    scf.if %17 {
      %24 = tpu.iota {dimensions = array<i32: 0>} : vector<128x256xi32>
      %25 = vector.broadcast %9 : i32 to vector<128x256xi32>
      %26 = arith.addi %25, %24 : vector<128x256xi32>
      %27 = tpu.iota {dimensions = array<i32: 1>} : vector<128x256xi32>
      %28 = vector.broadcast %10 : i32 to vector<128x256xi32>
      %29 = arith.addi %28, %27 : vector<128x256xi32>
      %30 = arith.cmpi eq, %26, %29 : vector<128x256xi32>
      %cst_12 = arith.constant -1.000000e+30 : f32
      %31 = vector.broadcast %cst_12 : f32 to vector<128x256xf32>
      %32 = arith.select %30, %31, %8 : vector<128x256xi1>, vector<128x256xf32>
      %c0_13 = arith.constant 0 : index
      %c0_14 = arith.constant 0 : index
      %33 = vector.load %arg6[%c0_13, %c0_14] : memref<128x128xf32, #tpu.memory_space<vmem>>, vector<128x128xf32>
      %34 = vector.extract_strided_slice %32 {offsets = [0, 0], sizes = [128, 128], strides = [1, 1]} : vector<128x256xf32> to vector<128x128xf32>
      %35 = vector.extract_strided_slice %32 {offsets = [0, 128], sizes = [128, 128], strides = [1, 1]} : vector<128x256xf32> to vector<128x128xf32>
      %36 = arith.maximumf %34, %35 : vector<128x128xf32>
      %37 = arith.maximumf %33, %36 : vector<128x128xf32>
      %c0_15 = arith.constant 0 : index
      %c0_16 = arith.constant 0 : index
      %38 = vector.load %arg7[%c0_15, %c0_16] : memref<128x128xf32, #tpu.memory_space<vmem>>, vector<128x128xf32>
      %39 = arith.subf %33, %37 : vector<128x128xf32>
      %40 = math.exp %39 : vector<128x128xf32>
      %41 = arith.mulf %38, %40 : vector<128x128xf32>
      %42 = vector.extract_strided_slice %32 {offsets = [0, 0], sizes = [128, 128], strides = [1, 1]} : vector<128x256xf32> to vector<128x128xf32>
      %43 = arith.subf %42, %37 : vector<128x128xf32>
      %44 = arith.truncf %43 : vector<128x128xf32> to vector<128x128xbf16>
      %45 = math.exp %44 : vector<128x128xbf16>
      %46 = arith.extf %45 : vector<128x128xbf16> to vector<128x128xf32>
      %47 = arith.addf %41, %46 : vector<128x128xf32>
      %48 = vector.extract_strided_slice %32 {offsets = [0, 128], sizes = [128, 128], strides = [1, 1]} : vector<128x256xf32> to vector<128x128xf32>
      %49 = arith.subf %48, %37 : vector<128x128xf32>
      %50 = arith.truncf %49 : vector<128x128xf32> to vector<128x128xbf16>
      %51 = math.exp %50 : vector<128x128xbf16>
      %52 = arith.extf %51 : vector<128x128xbf16> to vector<128x128xf32>
      %53 = arith.addf %47, %52 : vector<128x128xf32>
      %c0_17 = arith.constant 0 : index
      %c0_18 = arith.constant 0 : index
      %54 = vector.load %arg7[%c0_17, %c0_18] : memref<128x128xf32, #tpu.memory_space<vmem>>, vector<128x128xf32>
      tpu.vector_store %arg7[%c0_17, %c0_18], %53 {strides = array<i32>} : memref<128x128xf32, #tpu.memory_space<vmem>>, vector<128x128xf32>,
      %c0_19 = arith.constant 0 : index
      %c0_20 = arith.constant 0 : index
      %55 = vector.load %arg6[%c0_19, %c0_20] : memref<128x128xf32, #tpu.memory_space<vmem>>, vector<128x128xf32>
      tpu.vector_store %arg6[%c0_19, %c0_20], %37 {strides = array<i32>} : memref<128x128xf32, #tpu.memory_space<vmem>>, vector<128x128xf32>,
    } else {
    }
    %true = arith.constant true
    %18 = arith.xori %15, %true : i1
    %19 = arith.extui %18 : i1 to i32
    %c0_i32_9 = arith.constant 0 : i32
    %20 = arith.cmpi ne, %19, %c0_i32_9 : i32
    scf.if %20 {
      %c0_12 = arith.constant 0 : index
      %c0_13 = arith.constant 0 : index
      %24 = vector.load %arg6[%c0_12, %c0_13] : memref<128x128xf32, #tpu.memory_space<vmem>>, vector<128x128xf32>
      %25 = vector.extract_strided_slice %8 {offsets = [0, 0], sizes = [128, 128], strides = [1, 1]} : vector<128x256xf32> to vector<128x128xf32>
      %26 = vector.extract_strided_slice %8 {offsets = [0, 128], sizes = [128, 128], strides = [1, 1]} : vector<128x256xf32> to vector<128x128xf32>
      %27 = arith.maximumf %25, %26 : vector<128x128xf32>
      %28 = arith.maximumf %24, %27 : vector<128x128xf32>
      %c0_14 = arith.constant 0 : index
      %c0_15 = arith.constant 0 : index
      %29 = vector.load %arg7[%c0_14, %c0_15] : memref<128x128xf32, #tpu.memory_space<vmem>>, vector<128x128xf32>
      %30 = arith.subf %24, %28 : vector<128x128xf32>
      %31 = math.exp %30 : vector<128x128xf32>
      %32 = arith.mulf %29, %31 : vector<128x128xf32>
      %33 = vector.extract_strided_slice %8 {offsets = [0, 0], sizes = [128, 128], strides = [1, 1]} : vector<128x256xf32> to vector<128x128xf32>
      %34 = arith.subf %33, %28 : vector<128x128xf32>
      %35 = arith.truncf %34 : vector<128x128xf32> to vector<128x128xbf16>
      %36 = math.exp %35 : vector<128x128xbf16>
      %37 = arith.extf %36 : vector<128x128xbf16> to vector<128x128xf32>
      %38 = arith.addf %32, %37 : vector<128x128xf32>
      %39 = vector.extract_strided_slice %8 {offsets = [0, 128], sizes = [128, 128], strides = [1, 1]} : vector<128x256xf32> to vector<128x128xf32>
      %40 = arith.subf %39, %28 : vector<128x128xf32>
      %41 = arith.truncf %40 : vector<128x128xf32> to vector<128x128xbf16>
      %42 = math.exp %41 : vector<128x128xbf16>
      %43 = arith.extf %42 : vector<128x128xbf16> to vector<128x128xf32>
      %44 = arith.addf %38, %43 : vector<128x128xf32>
      %c0_16 = arith.constant 0 : index
      %c0_17 = arith.constant 0 : index
      %45 = vector.load %arg7[%c0_16, %c0_17] : memref<128x128xf32, #tpu.memory_space<vmem>>, vector<128x128xf32>
      tpu.vector_store %arg7[%c0_16, %c0_17], %44 {strides = array<i32>} : memref<128x128xf32, #tpu.memory_space<vmem>>, vector<128x128xf32>,
      %c0_18 = arith.constant 0 : index
      %c0_19 = arith.constant 0 : index
      %46 = vector.load %arg6[%c0_18, %c0_19] : memref<128x128xf32, #tpu.memory_space<vmem>>, vector<128x128xf32>
      tpu.vector_store %arg6[%c0_18, %c0_19], %28 {strides = array<i32>} : memref<128x128xf32, #tpu.memory_space<vmem>>, vector<128x128xf32>,
    } else {
    }
    %c0_i32_10 = arith.constant 0 : i32
    %21 = arith.cmpi eq, %arg1, %c0_i32_10 : i32
    %22 = arith.extui %21 : i1 to i32
    %c0_i32_11 = arith.constant 0 : i32
    %23 = arith.cmpi ne, %22, %c0_i32_11 : i32
    scf.if %23 {
      %c0_12 = arith.constant 0 : index
      %c0_13 = arith.constant 0 : index
      %24 = vector.load %arg6[%c0_12, %c0_13] : memref<128x128xf32, #tpu.memory_space<vmem>>, vector<128x128xf32>
      %c0_14 = arith.constant 0 : index
      %c0_15 = arith.constant 0 : index
      %25 = vector.load %arg7[%c0_14, %c0_15] : memref<128x128xf32, #tpu.memory_space<vmem>>, vector<128x128xf32>
      %cst_16 = arith.constant dense<0xFF800000> : vector<128xf32>
      %26 = vector.multi_reduction <maximumf>, %24, %cst_16 [1] : vector<128x128xf32> to vector<128xf32>
      %27 = vector.shape_cast %26 : vector<128xf32> to vector<128x1xf32>
      %28 = vector.broadcast %27 : vector<128x1xf32> to vector<128x128xf32>
      %29 = arith.subf %24, %28 : vector<128x128xf32>
      %30 = math.exp %29 : vector<128x128xf32>
      %31 = arith.mulf %30, %25 : vector<128x128xf32>
      %cst_17 = arith.constant dense<0.000000e+00> : vector<128xf32>
      %32 = vector.multi_reduction <add>, %31, %cst_17 [1] : vector<128x128xf32> to vector<128xf32>
      %33 = vector.shape_cast %32 : vector<128xf32> to vector<128x1xf32>
      %34 = math.log %33 : vector<128x1xf32>
      %35 = arith.addf %27, %34 : vector<128x1xf32>
      %c0_18 = arith.constant 0 : index
      %c0_19 = arith.constant 0 : index
      %36 = vector.load %arg5[%c0_18, %c0_19] : memref<128x1xf32, #tpu.memory_space<vmem>>, vector<128x1xf32>
      tpu.vector_store %arg5[%c0_18, %c0_19], %35 {strides = array<i32>} : memref<128x1xf32, #tpu.memory_space<vmem>>, vector<128x1xf32>,
    } else {
    }
    return
  }
  func.func @transform_0(%arg0: i32, %arg1: i32) -> (i32, i32) {
    %c0_i32 = arith.constant 0 : i32
    %c0_i32_0 = arith.constant 0 : i32
    return %arg0, %c0_i32 : i32, i32
  }
  func.func @transform_1(%arg0: i32, %arg1: i32) -> (i32, i32) {
    %c0_i32 = arith.constant 0 : i32
    %c0_i32_0 = arith.constant 0 : i32
    return %arg1, %c0_i32 : i32, i32
  }
  func.func @transform_2(%arg0: i32, %arg1: i32) -> (i32, i32) {
    %c0_i32 = arith.constant 0 : i32
    %c0_i32_0 = arith.constant 0 : i32
    return %c0_i32, %arg1 : i32, i32
  }
  func.func @transform_3(%arg0: i32, %arg1: i32) -> (i32, i32) {
    %c0_i32 = arith.constant 0 : i32
    %c0_i32_0 = arith.constant 0 : i32
    return %arg0, %c0_i32 : i32, i32
  }
}

</mosaic_0001>

<llo_original>
// kernel: tpu_custom_call.1
$region0: #{tpu_custom_call.1}
  #allocation0 [shape = 'u32[]', space=smem, size = 0x4, offset = 0x4, fixed_abs, tag = 'smem constant byte address 0x4 - core index']
  #allocation1 [shape = 'u32[144,128]{1,0:T(1,128)}', space=vmem, size = 0x12000, scoped, tag = 'internal scratch']
  #allocation2 [shape = 'f32[128,128]{1,0:T(8,128)}', space=vmem, size = 0x10000, scoped, tag = 'scratch operand']
  #allocation3 [shape = 'f32[128,128]{1,0:T(8,128)}', space=vmem, size = 0x10000, scoped, tag = 'scratch operand']
  %s0 = inlined_call_operand.hbm [shape: bf16[256,128], index: 0, kind: input, shape index: {}]
  %s1 = inlined_call_operand.hbm [shape: bf16[256,128], index: 1, kind: input, shape index: {}]
  %s2 = inlined_call_operand.vmem [shape: f32[1,256], index: 2, kind: input, shape index: {}]
  %s3 = inlined_call_operand.vmem [shape: f32[256,1], index: 3, kind: output, shape index: {}]
  %s4 = sld [smem:[#allocation0]]
  $region69: #{tpu_custom_call.1} parent=0
    _
  %s6 = ssub.s32 1, %s4
  %s7 = scalar_select 0, %s6, %s4
  $region1: #{tpu_custom_call.1} parent=0
    #allocation4 [shape = 'u8[65536]{0}', space=vmem, size = 0x10000, scoped, tag = 'input window, operand 0']
    #allocation5 [shape = 's32[2]{0}', space=sflag, size = 0x8, scoped, tag = 'scoped memory for tpu_custom_call.1']
    #allocation6 [shape = 'u8[65536]{0}', space=vmem, size = 0x10000, scoped, tag = 'input window, operand 1, single buffered']
    #allocation7 [shape = 's32[1]{0}', space=sflag, size = 0x4, scoped, tag = 'scoped memory for tpu_custom_call.1']
    %8 = vsyncpa [#allocation5], 0
    %s9 = scalar_lea.sflag [#allocation5], 1
    %10 = vsyncpa %s9, 0
    %11 = vsyncpa [#allocation7], 0
    loop: start=0, step=1, limit=4
    $region2: #{tpu_custom_call.1} parent=1 // loop_pre_header
      _
    $region3: #{tpu_custom_call.1} parent=1 // loop_header
      %s13 = sphi 0, %s17
      %p14 = scmp.ge.s32.totalorder %s13, 4
      %s20 = sphi 0, %s32
      %s21 = sphi 0, %s28
      %s22 = sphi 0, %s20
      %s23 = sphi 0, %s21
      %s24 = sphi 0, %s22
      %s25 = sphi 0, %s23
      %s35 = sphi 0, %s37
      %s38 = sphi 0, %s35
      %s39 = sphi 0, %s38
      %s55 = sphi 0, %s39
      %s61 = sphi 0, %s63
      %s64 = sphi 0, %s61
      %s65 = sphi 0, %s64
      %s81 = sphi 0, %s65
      %s87 = sphi 0, %s89
      %s90 = sphi 0, %s87
      %s91 = sphi 0, %s90
      %s107 = sphi 0, %s91
      %s113 = sphi 0, %s115
      %s116 = sphi 0, %s113
      %s117 = sphi 0, %s116
      %s133 = sphi 0, %s117
    $region4: #{tpu_custom_call.1} parent=1 // loop_header_branch
      %16 = sbr.rel (%p14) target = $region8
    $region5: #{tpu_custom_call.1} parent=1 // loop_body
      %s18 = ssub.s32 %s13, 1
      %s19 = ssub.s32 %s13, 2
      %s26 = sadd.s32 1, %s21
      %p27 = scmp.ge.s32.totalorder %s26, 1
      %s28 = scalar_select %p27, 0, %s26
      %s29 = sadd.s32 1, %s20
      %s30 = scalar_select %p27, %s29, %s20
      %p31 = scmp.ge.s32.totalorder %s30, 2
      %s32 = scalar_select %p31, 0, %s30
      %s33 = ssub.s32 %s20, %s32
      %p34 = scmp.eq.s32.totalorder %s33, 0
      %s36 = sadd.s32 %s35, 1
      %s37 = scalar_select %p34, %s35, %s36
      %p40 = pneg %p34
      %p41 = scmp.eq.s32.totalorder %s13, 1
      %p42 = por %p40, %p41
      %p43 = scmp.ne.s32.totalorder %s35, %s38
      %p44 = scmp.eq.s32.totalorder %s13, 0
      %p45 = por %p43, %p44
      %p46 = scmp.ne.s32.totalorder %s35, %s38
      %p47 = scmp.eq.s32.totalorder %s18, 1
      %p48 = por %p46, %p47
      %p49 = scmp.ne.s32.totalorder %s38, %s39
      %p50 = scmp.eq.s32.totalorder %s18, 0
      %p51 = por %p49, %p50
      %p52 = scmp.ne.s32.totalorder %s38, %s39
      %p53 = scmp.eq.s32.totalorder %s19, 1
      %p54 = por %p52, %p53
      %p56 = scmp.ne.s32.totalorder %s39, %s55
      %p57 = scmp.eq.s32.totalorder %s19, 0
      %p58 = por %p56, %p57
      %s59 = ssub.s32 %s21, %s28
      %p60 = scmp.eq.s32.totalorder %s59, 0
      %s62 = sadd.s32 %s61, 1
      %s63 = scalar_select %p60, %s61, %s62
      %p66 = pneg %p60
      %p67 = scmp.eq.s32.totalorder %s13, 1
      %p68 = por %p66, %p67
      %p69 = scmp.ne.s32.totalorder %s61, %s64
      %p70 = scmp.eq.s32.totalorder %s13, 0
      %p71 = por %p69, %p70
      %p72 = scmp.ne.s32.totalorder %s61, %s64
      %p73 = scmp.eq.s32.totalorder %s18, 1
      %p74 = por %p72, %p73
      %p75 = scmp.ne.s32.totalorder %s64, %s65
      %p76 = scmp.eq.s32.totalorder %s18, 0
      %p77 = por %p75, %p76
      %p78 = scmp.ne.s32.totalorder %s64, %s65
      %p79 = scmp.eq.s32.totalorder %s19, 1
      %p80 = por %p78, %p79
      %p82 = scmp.ne.s32.totalorder %s65, %s81
      %p83 = scmp.eq.s32.totalorder %s19, 0
      %p84 = por %p82, %p83
      %s85 = ssub.s32 %s21, %s28
      %p86 = scmp.eq.s32.totalorder %s85, 0
      %s88 = sadd.s32 %s87, 1
      %s89 = scalar_select %p86, %s87, %s88
      %p92 = pneg %p86
      %p93 = scmp.eq.s32.totalorder %s13, 1
      %p94 = por %p92, %p93
      %p95 = scmp.ne.s32.totalorder %s87, %s90
      %p96 = scmp.eq.s32.totalorder %s13, 0
      %p97 = por %p95, %p96
      %p98 = scmp.ne.s32.totalorder %s87, %s90
      %p99 = scmp.eq.s32.totalorder %s18, 1
      %p100 = por %p98, %p99
      %p101 = scmp.ne.s32.totalorder %s90, %s91
      %p102 = scmp.eq.s32.totalorder %s18, 0
      %p103 = por %p101, %p102
      %p104 = scmp.ne.s32.totalorder %s90, %s91
      %p105 = scmp.eq.s32.totalorder %s19, 1
      %p106 = por %p104, %p105
      %p108 = scmp.ne.s32.totalorder %s91, %s107
      %p109 = scmp.eq.s32.totalorder %s19, 0
      %p110 = por %p108, %p109
      %s111 = ssub.s32 %s20, %s32
      %p112 = scmp.eq.s32.totalorder %s111, 0
      %s114 = sadd.s32 %s113, 1
      %s115 = scalar_select %p112, %s113, %s114
      %p118 = pneg %p112
      %p119 = scmp.eq.s32.totalorder %s13, 1
      %p120 = por %p118, %p119
      %p121 = scmp.ne.s32.totalorder %s113, %s116
      %p122 = scmp.eq.s32.totalorder %s13, 0
      %p123 = por %p121, %p122
      %p124 = scmp.ne.s32.totalorder %s113, %s116
      %p125 = scmp.eq.s32.totalorder %s18, 1
      %p126 = por %p124, %p125
      %p127 = scmp.ne.s32.totalorder %s116, %s117
      %p128 = scmp.eq.s32.totalorder %s18, 0
      %p129 = por %p127, %p128
      %p130 = scmp.ne.s32.totalorder %s116, %s117
      %p131 = scmp.eq.s32.totalorder %s19, 1
      %p132 = por %p130, %p131
      %p134 = scmp.ne.s32.totalorder %s117, %s133
      %p135 = scmp.eq.s32.totalorder %s19, 0
      %p136 = por %p134, %p135
      %p137 = scmp.le.s32.totalorder 1, %s13
      %p138 = scmp.lt.s32.totalorder %s13, 3
      %p139 = pnand %p137, %p138
      %p140 = pneg %p139
      // Predicated region
      $region9: #{tpu_custom_call.1} parent=5 // pred_check
        _
      $region10: #{tpu_custom_call.1} parent=5 // pred_check_branch
        %142 = sbr.rel (%p139) target = $region12
      $region11: #{tpu_custom_call.1} parent=5 // pred_region
        %s143 = ssub.s32 %s13, 1
        // Predicated region
        $region13: #{tpu_custom_call.1} parent=11 // pred_check
          %p144 = pneg %p77
        $region14: #{tpu_custom_call.1} parent=11 // pred_check_branch
          %146 = sbr.rel (%p144) target = $region16
        $region15: #{tpu_custom_call.1} parent=11 // pred_region
          %s147 = smul.u32 32, %s23
          %s149 = ssub.s32 2048, 2048
          %150 = vsyncadd [#allocation7], %s149
          %s151 = smul.addr %s147, 64
          %s152 = scalar_lea.hbm %s1, %s151
          %s153 = sshll.u32 [#allocation6], 4
          %s154 = int_to_ptr.vmem [resolvable:$true] %s153
          %159 = dma.hbm_to_vmem [thread:$0]  %s152, 2048, %s154, [#allocation7], 64, 64, 4
        $region16: #{tpu_custom_call.1} parent=11 // pred_fallthru
          _
        // Predicated region
        $region17: #{tpu_custom_call.1} parent=11 // pred_check
          %p160 = pneg %p103
        $region18: #{tpu_custom_call.1} parent=11 // pred_check_branch
          %162 = sbr.rel (%p160) target = $region20
        $region19: #{tpu_custom_call.1} parent=11 // pred_region
          %s163 = smul.u32 2, %s23
          %p164 = scmp.lt.s32.totalorder %s163, 1
          %s165 = scalar_select %p164, %s163, 1
          %s166 = scalar_lea.vmem %s2, %s165
          %s167 = smul.u32 2, %s23
        $region20: #{tpu_custom_call.1} parent=11 // pred_fallthru
          _
      $region12: #{tpu_custom_call.1} parent=5 // pred_fallthru
        _
      %p168 = scmp.lt.s32.totalorder %s13, 2
      // Predicated region
      $region21: #{tpu_custom_call.1} parent=5 // pred_check
        %p169 = pneg %p168
      $region22: #{tpu_custom_call.1} parent=5 // pred_check_branch
        %171 = sbr.rel (%p169) target = $region24
      $region23: #{tpu_custom_call.1} parent=5 // pred_region
        // Predicated region
        $region25: #{tpu_custom_call.1} parent=23 // pred_check
          %p172 = pneg %p45
        $region26: #{tpu_custom_call.1} parent=23 // pred_check_branch
          %174 = sbr.rel (%p172) target = $region28
        $region27: #{tpu_custom_call.1} parent=23 // pred_region
          %s175 = sand.u32 %s35, 1
          %s176 = scalar_lea.sflag [#allocation5], %s175
          %s177 = sand.u32 %s35, 1
          %s178 = smul.addr %s177, 64
          %s179 = scalar_lea.vmem [#allocation4], %s178
          %s180 = smul.u32 16, %s20
          %s182 = ssub.s32 1024, 1024
          %183 = vsyncadd %s176, %s182
          %s184 = smul.addr %s180, 64
          %s185 = scalar_lea.hbm %s0, %s184
          %s186 = sshll.u32 %s179, 4
          %s187 = int_to_ptr.vmem [resolvable:$true] %s186
          %192 = dma.hbm_to_vmem [thread:$0]  %s185, 1024, %s187, %s176, 64, 64, 4
        $region28: #{tpu_custom_call.1} parent=23 // pred_fallthru
          _
      $region24: #{tpu_custom_call.1} parent=5 // pred_fallthru
        _
      %p193 = scmp.le.s32.totalorder 1, %s13
      %p194 = scmp.lt.s32.totalorder %s13, 3
      %p195 = pnand %p193, %p194
      %p196 = pneg %p195
      // Predicated region
      $region29: #{tpu_custom_call.1} parent=5 // pred_check
        _
      $region30: #{tpu_custom_call.1} parent=5 // pred_check_branch
        %198 = sbr.rel (%p195) target = $region32
      $region31: #{tpu_custom_call.1} parent=5 // pred_region
        %s199 = ssub.s32 %s13, 1
        %s200 = sand.u32 %s38, 1
        %s201 = scalar_lea.sflag [#allocation5], %s200
        %s202 = sand.u32 %s38, 1
        %s203 = smul.addr %s202, 64
        %s204 = scalar_lea.vmem [#allocation4], %s203
        // Predicated region
        $region33: #{tpu_custom_call.1} parent=31 // pred_check
          %p205 = pneg %p51
        $region34: #{tpu_custom_call.1} parent=31 // pred_check_branch
          %207 = sbr.rel (%p205) target = $region36
        $region35: #{tpu_custom_call.1} parent=31 // pred_region
          %208 = dma.done %s201, 1024
        $region36: #{tpu_custom_call.1} parent=31 // pred_fallthru
          _
        // Predicated region
        $region37: #{tpu_custom_call.1} parent=31 // pred_check
          %p209 = pneg %p77
        $region38: #{tpu_custom_call.1} parent=31 // pred_check_branch
          %211 = sbr.rel (%p209) target = $region40
        $region39: #{tpu_custom_call.1} parent=31 // pred_region
          %212 = dma.done [#allocation7], 2048
        $region40: #{tpu_custom_call.1} parent=31 // pred_fallthru
          _
        %s213 = sand.u32 %s38, 1
        %s214 = scalar_lea.sflag [#allocation5], %s213
        %s215 = sand.u32 %s38, 1
        %s216 = smul.addr %s215, 64
        %s217 = scalar_lea.vmem [#allocation4], %s216
        %p218 = pneg %p51
        %p219 = pneg %p48
        %p220 = pneg %p77
        %p221 = pneg %p74
        %s222 = smul.u32 2, %s23
        %p223 = scmp.lt.s32.totalorder %s222, 1
        %s224 = scalar_select %p223, %s222, 1
        %s225 = scalar_lea.vmem %s2, %s224
        %p226 = pneg %p103
        %p227 = pneg %p100
        %p228 = pneg %p129
        %p229 = pneg %p126
        %s230 = smul.u32 16, %s22
        %p231 = scmp.lt.s32.totalorder %s230, 31
        %s232 = scalar_select %p231, %s230, 31
        %s233 = smul.addr %s232, 8
        %s234 = scalar_lea.vmem %s3, %s233
        %s235 = smul.u32 16, %s22
        %s236 = smul.u32 32, %s23
        %s237 = smul.u32 2, %s23
        %p238 = scmp.lt.s32.totalorder %s237, 1
        %s239 = scalar_select %p238, %s237, 1
        %s240 = scalar_lea.vmem %s2, %s239
        %s241 = smul.u32 2, %s23
        %s242 = smul.u32 16, %s22
        %p243 = scmp.lt.s32.totalorder %s242, 31
        %s244 = scalar_select %p243, %s242, 31
        %s245 = smul.addr %s244, 8
        %s246 = scalar_lea.vmem %s3, %s245
        %s247 = smul.u32 16, %s22
        %p249 = scmp.eq.s32.totalorder %s23, 0
        // Predicated region
        $region41: #{tpu_custom_call.1} parent=31 // pred_check
          %p250 = pneg %p249
        $region42: #{tpu_custom_call.1} parent=31 // pred_check_branch
          %252 = sbr.rel (%p250) target = $region44
        $region43: #{tpu_custom_call.1} parent=31 // pred_region
          %253 = vst [vmem:[#allocation2] sm:$0xff] -inf
          %254 = vst [vmem:[#allocation2 + $0x8] sm:$0xff] -inf
          %255 = vst [vmem:[#allocation2 + $0x10] sm:$0xff] -inf
          %256 = vst [vmem:[#allocation2 + $0x18] sm:$0xff] -inf
          %257 = vst [vmem:[#allocation2 + $0x20] sm:$0xff] -inf
          %258 = vst [vmem:[#allocation2 + $0x28] sm:$0xff] -inf
          %259 = vst [vmem:[#allocation2 + $0x30] sm:$0xff] -inf
          %260 = vst [vmem:[#allocation2 + $0x38] sm:$0xff] -inf
          %261 = vst [vmem:[#allocation2 + $0x40] sm:$0xff] -inf
          %262 = vst [vmem:[#allocation2 + $0x48] sm:$0xff] -inf
          %263 = vst [vmem:[#allocation2 + $0x50] sm:$0xff] -inf
          %264 = vst [vmem:[#allocation2 + $0x58] sm:$0xff] -inf
          %265 = vst [vmem:[#allocation2 + $0x60] sm:$0xff] -inf
          %266 = vst [vmem:[#allocation2 + $0x68] sm:$0xff] -inf
          %267 = vst [vmem:[#allocation2 + $0x70] sm:$0xff] -inf
          %268 = vst [vmem:[#allocation2 + $0x78] sm:$0xff] -inf
          %269 = vst [vmem:[#allocation3] sm:$0xff] 0.0
          %270 = vst [vmem:[#allocation3 + $0x8] sm:$0xff] 0.0
          %271 = vst [vmem:[#allocation3 + $0x10] sm:$0xff] 0.0
          %272 = vst [vmem:[#allocation3 + $0x18] sm:$0xff] 0.0
          %273 = vst [vmem:[#allocation3 + $0x20] sm:$0xff] 0.0
          %274 = vst [vmem:[#allocation3 + $0x28] sm:$0xff] 0.0
          %275 = vst [vmem:[#allocation3 + $0x30] sm:$0xff] 0.0
          %276 = vst [vmem:[#allocation3 + $0x38] sm:$0xff] 0.0
          %277 = vst [vmem:[#allocation3 + $0x40] sm:$0xff] 0.0
          %278 = vst [vmem:[#allocation3 + $0x48] sm:$0xff] 0.0
          %279 = vst [vmem:[#allocation3 + $0x50] sm:$0xff] 0.0
          %280 = vst [vmem:[#allocation3 + $0x58] sm:$0xff] 0.0
          %281 = vst [vmem:[#allocation3 + $0x60] sm:$0xff] 0.0
          %282 = vst [vmem:[#allocation3 + $0x68] sm:$0xff] 0.0
          %283 = vst [vmem:[#allocation3 + $0x70] sm:$0xff] 0.0
          %284 = vst [vmem:[#allocation3 + $0x78] sm:$0xff] 0.0
        $region44: #{tpu_custom_call.1} parent=31 // pred_fallthru
          _
        %v285 = vld [vmem:[%s204] sm:$0xf]
        %v286 = vld [vmem:[%s204 + $0x4] sm:$0xf]
        %v287 = vld [vmem:[%s204 + $0x8] sm:$0xf]
        %v288 = vld [vmem:[%s204 + $0xc] sm:$0xf]
        %v289 = vld [vmem:[%s204 + $0x10] sm:$0xf]
        %v290 = vld [vmem:[%s204 + $0x14] sm:$0xf]
        %v291 = vld [vmem:[%s204 + $0x18] sm:$0xf]
        %v292 = vld [vmem:[%s204 + $0x1c] sm:$0xf]
        %v293 = vld [vmem:[%s204 + $0x20] sm:$0xf]
        %v294 = vld [vmem:[%s204 + $0x24] sm:$0xf]
        %v295 = vld [vmem:[%s204 + $0x28] sm:$0xf]
        %v296 = vld [vmem:[%s204 + $0x2c] sm:$0xf]
        %v297 = vld [vmem:[%s204 + $0x30] sm:$0xf]
        %v298 = vld [vmem:[%s204 + $0x34] sm:$0xf]
        %v299 = vld [vmem:[%s204 + $0x38] sm:$0xf]
        %v300 = vld [vmem:[%s204 + $0x3c] sm:$0xf]
        %v301 = vld [vmem:[#allocation6] sm:$0xf]
        %v302 = vld [vmem:[#allocation6 + $0x4] sm:$0xf]
        %v303 = vld [vmem:[#allocation6 + $0x8] sm:$0xf]
        %v304 = vld [vmem:[#allocation6 + $0xc] sm:$0xf]
        %v305 = vld [vmem:[#allocation6 + $0x10] sm:$0xf]
        %v306 = vld [vmem:[#allocation6 + $0x14] sm:$0xf]
        %v307 = vld [vmem:[#allocation6 + $0x18] sm:$0xf]
        %v308 = vld [vmem:[#allocation6 + $0x1c] sm:$0xf]
        %v309 = vld [vmem:[#allocation6 + $0x20] sm:$0xf]
        %v310 = vld [vmem:[#allocation6 + $0x24] sm:$0xf]
        %v311 = vld [vmem:[#allocation6 + $0x28] sm:$0xf]
        %v312 = vld [vmem:[#allocation6 + $0x2c] sm:$0xf]
        %v313 = vld [vmem:[#allocation6 + $0x30] sm:$0xf]
        %v314 = vld [vmem:[#allocation6 + $0x34] sm:$0xf]
        %v315 = vld [vmem:[#allocation6 + $0x38] sm:$0xf]
        %v316 = vld [vmem:[#allocation6 + $0x3c] sm:$0xf]
        %v317 = vld [vmem:[#allocation6 + $0x40] sm:$0xf]
        %v318 = vld [vmem:[#allocation6 + $0x44] sm:$0xf]
        %v319 = vld [vmem:[#allocation6 + $0x48] sm:$0xf]
        %v320 = vld [vmem:[#allocation6 + $0x4c] sm:$0xf]
        %v321 = vld [vmem:[#allocation6 + $0x50] sm:$0xf]
        %v322 = vld [vmem:[#allocation6 + $0x54] sm:$0xf]
        %v323 = vld [vmem:[#allocation6 + $0x58] sm:$0xf]
        %v324 = vld [vmem:[#allocation6 + $0x5c] sm:$0xf]
        %v325 = vld [vmem:[#allocation6 + $0x60] sm:$0xf]
        %v326 = vld [vmem:[#allocation6 + $0x64] sm:$0xf]
        %v327 = vld [vmem:[#allocation6 + $0x68] sm:$0xf]
        %v328 = vld [vmem:[#allocation6 + $0x6c] sm:$0xf]
        %v329 = vld [vmem:[#allocation6 + $0x70] sm:$0xf]
        %v330 = vld [vmem:[#allocation6 + $0x74] sm:$0xf]
        %v331 = vld [vmem:[#allocation6 + $0x78] sm:$0xf]
        %v332 = vld [vmem:[#allocation6 + $0x7c] sm:$0xf]
        %v333 = vld [vmem:[%s240] sm:$0x3]
        %v335 = vlaneseq
        %v336 = vshrl.u32 %v335, 7
        %v337 = vsub.s32 0, %v336
        %v338 = vrot.slane %v333, %v337
        %v339 = vlaneseq
        %v340 = vshrl.u32 %v339, 7
        %v341 = vsub.s32 1, %v340
        %v342 = vrot.slane %v333, %v341
        %v361 = vunpack.c.l.b16 %v285
        %v362 = vunpack.c.l.b16 %v286
        %v363 = vunpack.c.l.b16 %v287
        %v364 = vunpack.c.l.b16 %v288
        %v365 = vunpack.c.l.b16 %v289
        %v366 = vunpack.c.l.b16 %v290
        %v367 = vunpack.c.l.b16 %v291
        %v368 = vunpack.c.l.b16 %v292
        %v369 = vunpack.c.l.b16 %v293
        %v370 = vunpack.c.l.b16 %v294
        %v371 = vunpack.c.l.b16 %v295
        %v372 = vunpack.c.l.b16 %v296
        %v373 = vunpack.c.l.b16 %v297
        %v374 = vunpack.c.l.b16 %v298
        %v375 = vunpack.c.l.b16 %v299
        %v376 = vunpack.c.l.b16 %v300
        %v377 = vpack.c.b16 %v362, %v361
        %v378 = vpack.c.b16 %v364, %v363
        %v379 = vpack.c.b16 %v366, %v365
        %v380 = vpack.c.b16 %v368, %v367
        %v381 = vpack.c.b16 %v370, %v369
        %v382 = vpack.c.b16 %v372, %v371
        %v383 = vpack.c.b16 %v374, %v373
        %v384 = vpack.c.b16 %v376, %v375
        %v425 = vunpack.c.l.b16 %v301
        %v426 = vunpack.c.l.b16 %v302
        %v427 = vunpack.c.l.b16 %v303
        %v428 = vunpack.c.l.b16 %v304
        %v429 = vunpack.c.l.b16 %v305
        %v430 = vunpack.c.l.b16 %v306
        %v431 = vunpack.c.l.b16 %v307
        %v432 = vunpack.c.l.b16 %v308
        %v433 = vunpack.c.l.b16 %v309
        %v434 = vunpack.c.l.b16 %v310
        %v435 = vunpack.c.l.b16 %v311
        %v436 = vunpack.c.l.b16 %v312
        %v437 = vunpack.c.l.b16 %v313
        %v438 = vunpack.c.l.b16 %v314
        %v439 = vunpack.c.l.b16 %v315
        %v440 = vunpack.c.l.b16 %v316
        %v441 = vunpack.c.l.b16 %v317
        %v442 = vunpack.c.l.b16 %v318
        %v443 = vunpack.c.l.b16 %v319
        %v444 = vunpack.c.l.b16 %v320
        %v445 = vunpack.c.l.b16 %v321
        %v446 = vunpack.c.l.b16 %v322
        %v447 = vunpack.c.l.b16 %v323
        %v448 = vunpack.c.l.b16 %v324
        %v449 = vunpack.c.l.b16 %v325
        %v450 = vunpack.c.l.b16 %v326
        %v451 = vunpack.c.l.b16 %v327
        %v452 = vunpack.c.l.b16 %v328
        %v453 = vunpack.c.l.b16 %v329
        %v454 = vunpack.c.l.b16 %v330
        %v455 = vunpack.c.l.b16 %v331
        %v456 = vunpack.c.l.b16 %v332
        %v457 = vpack.c.b16 %v426, %v425
        %v458 = vpack.c.b16 %v428, %v427
        %v459 = vpack.c.b16 %v430, %v429
        %v460 = vpack.c.b16 %v432, %v431
        %v461 = vpack.c.b16 %v434, %v433
        %v462 = vpack.c.b16 %v436, %v435
        %v463 = vpack.c.b16 %v438, %v437
        %v464 = vpack.c.b16 %v440, %v439
        %v465 = vpack.c.b16 %v442, %v441
        %v466 = vpack.c.b16 %v444, %v443
        %v467 = vpack.c.b16 %v446, %v445
        %v468 = vpack.c.b16 %v448, %v447
        %v469 = vpack.c.b16 %v450, %v449
        %v470 = vpack.c.b16 %v452, %v451
        %v471 = vpack.c.b16 %v454, %v453
        %v472 = vpack.c.b16 %v456, %v455
        %489 = vmatprep.subr.bf16.mxu0 0
        %490 = vmatpush1.bf16.xpose.msra.mxu0 %v457
        %491 = vmatprep.subr.bf16.mxu0 0
        %492 = vmatpush1.bf16.xpose.msra.mxu0 %v458
        %493 = vmatprep.subr.bf16.mxu0 0
        %494 = vmatpush1.bf16.xpose.msra.mxu0 %v459
        %495 = vmatprep.subr.bf16.mxu0 0
        %496 = vmatpush1.bf16.xpose.msra.mxu0 %v460
        %497 = vmatprep.subr.bf16.mxu0 0
        %498 = vmatpush1.bf16.xpose.msra.mxu0 %v461
        %499 = vmatprep.subr.bf16.mxu0 0
        %500 = vmatpush1.bf16.xpose.msra.mxu0 %v462
        %501 = vmatprep.subr.bf16.mxu0 0
        %502 = vmatpush1.bf16.xpose.msra.mxu0 %v463
        %503 = vmatprep.subr.bf16.mxu0 0
        %504 = vmatpush1.bf16.xpose.msra.mxu0 %v464
        %505 = vmatprep.subr.bf16.mxu0 0
        %506 = vmatpush1.bf16.xpose.msra.mxu0 %v465
        %507 = vmatprep.subr.bf16.mxu0 0
        %508 = vmatpush1.bf16.xpose.msra.mxu0 %v466
        %509 = vmatprep.subr.bf16.mxu0 0
        %510 = vmatpush1.bf16.xpose.msra.mxu0 %v467
        %511 = vmatprep.subr.bf16.mxu0 0
        %512 = vmatpush1.bf16.xpose.msra.mxu0 %v468
        %513 = vmatprep.subr.bf16.mxu0 0
        %514 = vmatpush1.bf16.xpose.msra.mxu0 %v469
        %515 = vmatprep.subr.bf16.mxu0 0
        %516 = vmatpush1.bf16.xpose.msra.mxu0 %v470
        %517 = vmatprep.subr.bf16.mxu0 0
        %518 = vmatpush1.bf16.xpose.msra.mxu0 %v471
        %519 = vmatprep.subr.bf16.mxu0 0
        %520 = vmatpush1.bf16.xpose.msra.mxu0 %v472
        %521 = vmatprep.mubr.bf16.mxu0 0
        %522 = vmatmul.mubr.bf16.gmra.mrb[0].mxu0 %v377
        %v523 = vpop.f32.mrb[0].mxu0
        %v524 = vadd.f32 %v338, %v523
        %v525 = vpop.f32.mrb[0].mxu0
        %v526 = vadd.f32 %v342, %v525
        %v527 = vpop.f32.mrb[0].mxu0
        %v528 = vadd.f32 %v338, %v527
        %v529 = vpop.f32.mrb[0].mxu0
        %v530 = vadd.f32 %v342, %v529
        %531 = vmatprep.mubr.bf16.mxu0 0
        %532 = vmatmul.mubr.bf16.gmra.mrb[0].mxu0 %v378
        %v533 = vpop.f32.mrb[0].mxu0
        %v534 = vadd.f32 %v338, %v533
        %v535 = vpop.f32.mrb[0].mxu0
        %v536 = vadd.f32 %v342, %v535
        %v537 = vpop.f32.mrb[0].mxu0
        %v538 = vadd.f32 %v338, %v537
        %v539 = vpop.f32.mrb[0].mxu0
        %v540 = vadd.f32 %v342, %v539
        %541 = vmatprep.mubr.bf16.mxu0 0
        %542 = vmatmul.mubr.bf16.gmra.mrb[0].mxu0 %v379
        %v543 = vpop.f32.mrb[0].mxu0
        %v544 = vadd.f32 %v338, %v543
        %v545 = vpop.f32.mrb[0].mxu0
        %v546 = vadd.f32 %v342, %v545
        %v547 = vpop.f32.mrb[0].mxu0
        %v548 = vadd.f32 %v338, %v547
        %v549 = vpop.f32.mrb[0].mxu0
        %v550 = vadd.f32 %v342, %v549
        %551 = vmatprep.mubr.bf16.mxu0 0
        %552 = vmatmul.mubr.bf16.gmra.mrb[0].mxu0 %v380
        %v553 = vpop.f32.mrb[0].mxu0
        %v554 = vadd.f32 %v338, %v553
        %v555 = vpop.f32.mrb[0].mxu0
        %v556 = vadd.f32 %v342, %v555
        %v557 = vpop.f32.mrb[0].mxu0
        %v558 = vadd.f32 %v338, %v557
        %v559 = vpop.f32.mrb[0].mxu0
        %v560 = vadd.f32 %v342, %v559
        %561 = vmatprep.mubr.bf16.mxu0 0
        %562 = vmatmul.mubr.bf16.gmra.mrb[0].mxu0 %v381
        %v563 = vpop.f32.mrb[0].mxu0
        %v564 = vadd.f32 %v338, %v563
        %v565 = vpop.f32.mrb[0].mxu0
        %v566 = vadd.f32 %v342, %v565
        %v567 = vpop.f32.mrb[0].mxu0
        %v568 = vadd.f32 %v338, %v567
        %v569 = vpop.f32.mrb[0].mxu0
        %v570 = vadd.f32 %v342, %v569
        %571 = vmatprep.mubr.bf16.mxu0 0
        %572 = vmatmul.mubr.bf16.gmra.mrb[0].mxu0 %v382
        %v573 = vpop.f32.mrb[0].mxu0
        %v574 = vadd.f32 %v338, %v573
        %v575 = vpop.f32.mrb[0].mxu0
        %v576 = vadd.f32 %v342, %v575
        %v577 = vpop.f32.mrb[0].mxu0
        %v578 = vadd.f32 %v338, %v577
        %v579 = vpop.f32.mrb[0].mxu0
        %v580 = vadd.f32 %v342, %v579
        %581 = vmatprep.mubr.bf16.mxu0 0
        %582 = vmatmul.mubr.bf16.gmra.mrb[0].mxu0 %v383
        %v583 = vpop.f32.mrb[0].mxu0
        %v584 = vadd.f32 %v338, %v583
        %v585 = vpop.f32.mrb[0].mxu0
        %v586 = vadd.f32 %v342, %v585
        %v587 = vpop.f32.mrb[0].mxu0
        %v588 = vadd.f32 %v338, %v587
        %v589 = vpop.f32.mrb[0].mxu0
        %v590 = vadd.f32 %v342, %v589
        %591 = vmatprep.mubr.bf16.mxu0 0
        %592 = vmatmul.mubr.bf16.gmra.mrb[0].mxu0 %v384
        %v593 = vpop.f32.mrb[0].mxu0
        %v594 = vadd.f32 %v338, %v593
        %v595 = vpop.f32.mrb[0].mxu0
        %v596 = vadd.f32 %v342, %v595
        %v597 = vpop.f32.mrb[0].mxu0
        %v598 = vadd.f32 %v338, %v597
        %v599 = vpop.f32.mrb[0].mxu0
        %v600 = vadd.f32 %v342, %v599
        %601 = vdwg.mxu0
        %s602 = smul.u32 %s22, 128
        %s603 = smul.u32 %s23, 256
        %s604 = sadd.s32 %s603, 256
        %p605 = scmp.lt.s32.totalorder %s602, %s604
        %s606 = sadd.s32 %s602, 128
        %p607 = scmp.lt.s32.totalorder %s603, %s606
        %p608 = pnand %p605, %p607
        %p609 = pneg %p608
        // Predicated region
        $region45: #{tpu_custom_call.1} parent=31 // pred_check
          _
        $region46: #{tpu_custom_call.1} parent=31 // pred_check_branch
          %611 = sbr.rel (%p608) target = $region48
        $region47: #{tpu_custom_call.1} parent=31 // pred_region
          %v612 = vlaneseq
          %v613 = vshrl.u32 %v612, 7
          %v614 = vadd.s32 %v613, 8
          %v615 = vadd.s32 %v613, 16
          %v616 = vadd.s32 %v613, 24
          %v617 = vadd.s32 %v613, 32
          %v618 = vadd.s32 %v613, 40
          %v619 = vadd.s32 %v613, 48
          %v620 = vadd.s32 %v613, 56
          %v621 = vadd.s32 %v613, 64
          %v622 = vadd.s32 %v613, 72
          %v623 = vadd.s32 %v613, 80
          %v624 = vadd.s32 %v613, 88
          %v625 = vadd.s32 %v613, 96
          %v626 = vadd.s32 %v613, 104
          %v627 = vadd.s32 %v613, 112
          %v628 = vadd.s32 %v613, 120
          %v629 = vstv %s602
          %v630 = vadd.s32 %v629, %v613
          %v631 = vadd.s32 %v629, %v614
          %v632 = vadd.s32 %v629, %v615
          %v633 = vadd.s32 %v629, %v616
          %v634 = vadd.s32 %v629, %v617
          %v635 = vadd.s32 %v629, %v618
          %v636 = vadd.s32 %v629, %v619
          %v637 = vadd.s32 %v629, %v620
          %v638 = vadd.s32 %v629, %v621
          %v639 = vadd.s32 %v629, %v622
          %v640 = vadd.s32 %v629, %v623
          %v641 = vadd.s32 %v629, %v624
          %v642 = vadd.s32 %v629, %v625
          %v643 = vadd.s32 %v629, %v626
          %v644 = vadd.s32 %v629, %v627
          %v645 = vadd.s32 %v629, %v628
          %v646 = vlaneseq
          %v647 = vand.u32 %v646, 127
          %v648 = vadd.s32 %v647, 128
          %v649 = vstv %s603
          %v650 = vadd.s32 %v649, %v647
          %v651 = vadd.s32 %v649, %v648
          %vm652 = vcmp.eq.s32.totalorder %v630, %v650
          %vm653 = vcmp.eq.s32.totalorder %v630, %v651
          %vm654 = vcmp.eq.s32.totalorder %v631, %v650
          %vm655 = vcmp.eq.s32.totalorder %v631, %v651
          %vm656 = vcmp.eq.s32.totalorder %v632, %v650
          %vm657 = vcmp.eq.s32.totalorder %v632, %v651
          %vm658 = vcmp.eq.s32.totalorder %v633, %v650
          %vm659 = vcmp.eq.s32.totalorder %v633, %v651
          %vm660 = vcmp.eq.s32.totalorder %v634, %v650
          %vm661 = vcmp.eq.s32.totalorder %v634, %v651
          %vm662 = vcmp.eq.s32.totalorder %v635, %v650
          %vm663 = vcmp.eq.s32.totalorder %v635, %v651
          %vm664 = vcmp.eq.s32.totalorder %v636, %v650
          %vm665 = vcmp.eq.s32.totalorder %v636, %v651
          %vm666 = vcmp.eq.s32.totalorder %v637, %v650
          %vm667 = vcmp.eq.s32.totalorder %v637, %v651
          %vm668 = vcmp.eq.s32.totalorder %v638, %v650
          %vm669 = vcmp.eq.s32.totalorder %v638, %v651
          %vm670 = vcmp.eq.s32.totalorder %v639, %v650
          %vm671 = vcmp.eq.s32.totalorder %v639, %v651
          %vm672 = vcmp.eq.s32.totalorder %v640, %v650
          %vm673 = vcmp.eq.s32.totalorder %v640, %v651
          %vm674 = vcmp.eq.s32.totalorder %v641, %v650
          %vm675 = vcmp.eq.s32.totalorder %v641, %v651
          %vm676 = vcmp.eq.s32.totalorder %v642, %v650
          %vm677 = vcmp.eq.s32.totalorder %v642, %v651
          %vm678 = vcmp.eq.s32.totalorder %v643, %v650
          %vm679 = vcmp.eq.s32.totalorder %v643, %v651
          %vm680 = vcmp.eq.s32.totalorder %v644, %v650
          %vm681 = vcmp.eq.s32.totalorder %v644, %v651
          %vm682 = vcmp.eq.s32.totalorder %v645, %v650
          %vm683 = vcmp.eq.s32.totalorder %v645, %v651
          %v684 = vsel %vm652, -1e+30, %v524
          %v685 = vsel %vm653, -1e+30, %v526
          %v686 = vsel %vm654, -1e+30, %v528
          %v687 = vsel %vm655, -1e+30, %v530
          %v688 = vsel %vm656, -1e+30, %v534
          %v689 = vsel %vm657, -1e+30, %v536
          %v690 = vsel %vm658, -1e+30, %v538
          %v691 = vsel %vm659, -1e+30, %v540
          %v692 = vsel %vm660, -1e+30, %v544
          %v693 = vsel %vm661, -1e+30, %v546
          %v694 = vsel %vm662, -1e+30, %v548
          %v695 = vsel %vm663, -1e+30, %v550
          %v696 = vsel %vm664, -1e+30, %v554
          %v697 = vsel %vm665, -1e+30, %v556
          %v698 = vsel %vm666, -1e+30, %v558
          %v699 = vsel %vm667, -1e+30, %v560
          %v700 = vsel %vm668, -1e+30, %v564
          %v701 = vsel %vm669, -1e+30, %v566
          %v702 = vsel %vm670, -1e+30, %v568
          %v703 = vsel %vm671, -1e+30, %v570
          %v704 = vsel %vm672, -1e+30, %v574
          %v705 = vsel %vm673, -1e+30, %v576
          %v706 = vsel %vm674, -1e+30, %v578
          %v707 = vsel %vm675, -1e+30, %v580
          %v708 = vsel %vm676, -1e+30, %v584
          %v709 = vsel %vm677, -1e+30, %v586
          %v710 = vsel %vm678, -1e+30, %v588
          %v711 = vsel %vm679, -1e+30, %v590
          %v712 = vsel %vm680, -1e+30, %v594
          %v713 = vsel %vm681, -1e+30, %v596
          %v714 = vsel %vm682, -1e+30, %v598
          %v715 = vsel %vm683, -1e+30, %v600
          %v716 = vld [vmem:[#allocation2] sm:$0xff]
          %v717 = vld [vmem:[#allocation2 + $0x8] sm:$0xff]
          %v718 = vld [vmem:[#allocation2 + $0x10] sm:$0xff]
          %v719 = vld [vmem:[#allocation2 + $0x18] sm:$0xff]
          %v720 = vld [vmem:[#allocation2 + $0x20] sm:$0xff]
          %v721 = vld [vmem:[#allocation2 + $0x28] sm:$0xff]
          %v722 = vld [vmem:[#allocation2 + $0x30] sm:$0xff]
          %v723 = vld [vmem:[#allocation2 + $0x38] sm:$0xff]
          %v724 = vld [vmem:[#allocation2 + $0x40] sm:$0xff]
          %v725 = vld [vmem:[#allocation2 + $0x48] sm:$0xff]
          %v726 = vld [vmem:[#allocation2 + $0x50] sm:$0xff]
          %v727 = vld [vmem:[#allocation2 + $0x58] sm:$0xff]
          %v728 = vld [vmem:[#allocation2 + $0x60] sm:$0xff]
          %v729 = vld [vmem:[#allocation2 + $0x68] sm:$0xff]
          %v730 = vld [vmem:[#allocation2 + $0x70] sm:$0xff]
          %v731 = vld [vmem:[#allocation2 + $0x78] sm:$0xff]
          %v732 = vmax.f32 %v684, %v685
          %v733 = vmax.f32 %v686, %v687
          %v734 = vmax.f32 %v688, %v689
          %v735 = vmax.f32 %v690, %v691
          %v736 = vmax.f32 %v692, %v693
          %v737 = vmax.f32 %v694, %v695
          %v738 = vmax.f32 %v696, %v697
          %v739 = vmax.f32 %v698, %v699
          %v740 = vmax.f32 %v700, %v701
          %v741 = vmax.f32 %v702, %v703
          %v742 = vmax.f32 %v704, %v705
          %v743 = vmax.f32 %v706, %v707
          %v744 = vmax.f32 %v708, %v709
          %v745 = vmax.f32 %v710, %v711
          %v746 = vmax.f32 %v712, %v713
          %v747 = vmax.f32 %v714, %v715
          %v748 = vmax.f32 %v716, %v732
          %v749 = vmax.f32 %v717, %v733
          %v750 = vmax.f32 %v718, %v734
          %v751 = vmax.f32 %v719, %v735
          %v752 = vmax.f32 %v720, %v736
          %v753 = vmax.f32 %v721, %v737
          %v754 = vmax.f32 %v722, %v738
          %v755 = vmax.f32 %v723, %v739
          %v756 = vmax.f32 %v724, %v740
          %v757 = vmax.f32 %v725, %v741
          %v758 = vmax.f32 %v726, %v742
          %v759 = vmax.f32 %v727, %v743
          %v760 = vmax.f32 %v728, %v744
          %v761 = vmax.f32 %v729, %v745
          %v762 = vmax.f32 %v730, %v746
          %v763 = vmax.f32 %v731, %v747
          %v764 = vld [vmem:[#allocation3] sm:$0xff]
          %v765 = vld [vmem:[#allocation3 + $0x8] sm:$0xff]
          %v766 = vld [vmem:[#allocation3 + $0x10] sm:$0xff]
          %v767 = vld [vmem:[#allocation3 + $0x18] sm:$0xff]
          %v768 = vld [vmem:[#allocation3 + $0x20] sm:$0xff]
          %v769 = vld [vmem:[#allocation3 + $0x28] sm:$0xff]
          %v770 = vld [vmem:[#allocation3 + $0x30] sm:$0xff]
          %v771 = vld [vmem:[#allocation3 + $0x38] sm:$0xff]
          %v772 = vld [vmem:[#allocation3 + $0x40] sm:$0xff]
          %v773 = vld [vmem:[#allocation3 + $0x48] sm:$0xff]
          %v774 = vld [vmem:[#allocation3 + $0x50] sm:$0xff]
          %v775 = vld [vmem:[#allocation3 + $0x58] sm:$0xff]
          %v776 = vld [vmem:[#allocation3 + $0x60] sm:$0xff]
          %v777 = vld [vmem:[#allocation3 + $0x68] sm:$0xff]
          %v778 = vld [vmem:[#allocation3 + $0x70] sm:$0xff]
          %v779 = vld [vmem:[#allocation3 + $0x78] sm:$0xff]
          %v780 = vsub.f32 %v716, %v748
          %v781 = vsub.f32 %v717, %v749
          %v782 = vsub.f32 %v718, %v750
          %v783 = vsub.f32 %v719, %v751
          %v784 = vsub.f32 %v720, %v752
          %v785 = vsub.f32 %v721, %v753
          %v786 = vsub.f32 %v722, %v754
          %v787 = vsub.f32 %v723, %v755
          %v788 = vsub.f32 %v724, %v756
          %v789 = vsub.f32 %v725, %v757
          %v790 = vsub.f32 %v726, %v758
          %v791 = vsub.f32 %v727, %v759
          %v792 = vsub.f32 %v728, %v760
          %v793 = vsub.f32 %v729, %v761
          %v794 = vsub.f32 %v730, %v762
          %v795 = vsub.f32 %v731, %v763
          %v796 = vmul.f32 %v780, 1.442695
          %v797 = vpow.pop %v796
          %v798 = vmul.f32 %v781, 1.442695
          %v799 = vpow.pop %v798
          %v800 = vmul.f32 %v782, 1.442695
          %v801 = vpow.pop %v800
          %v802 = vmul.f32 %v783, 1.442695
          %v803 = vpow.pop %v802
          %v804 = vmul.f32 %v784, 1.442695
          %v805 = vpow.pop %v804
          %v806 = vmul.f32 %v785, 1.442695
          %v807 = vpow.pop %v806
          %v808 = vmul.f32 %v786, 1.442695
          %v809 = vpow.pop %v808
          %v810 = vmul.f32 %v787, 1.442695
          %v811 = vpow.pop %v810
          %v812 = vmul.f32 %v788, 1.442695
          %v813 = vpow.pop %v812
          %v814 = vmul.f32 %v789, 1.442695
          %v815 = vpow.pop %v814
          %v816 = vmul.f32 %v790, 1.442695
          %v817 = vpow.pop %v816
          %v818 = vmul.f32 %v791, 1.442695
          %v819 = vpow.pop %v818
          %v820 = vmul.f32 %v792, 1.442695
          %v821 = vpow.pop %v820
          %v822 = vmul.f32 %v793, 1.442695
          %v823 = vpow.pop %v822
          %v824 = vmul.f32 %v794, 1.442695
          %v825 = vpow.pop %v824
          %v826 = vmul.f32 %v795, 1.442695
          %v827 = vpow.pop %v826
          %v828 = vmul.f32 %v764, %v797
          %v829 = vmul.f32 %v765, %v799
          %v830 = vmul.f32 %v766, %v801
          %v831 = vmul.f32 %v767, %v803
          %v832 = vmul.f32 %v768, %v805
          %v833 = vmul.f32 %v769, %v807
          %v834 = vmul.f32 %v770, %v809
          %v835 = vmul.f32 %v771, %v811
          %v836 = vmul.f32 %v772, %v813
          %v837 = vmul.f32 %v773, %v815
          %v838 = vmul.f32 %v774, %v817
          %v839 = vmul.f32 %v775, %v819
          %v840 = vmul.f32 %v776, %v821
          %v841 = vmul.f32 %v777, %v823
          %v842 = vmul.f32 %v778, %v825
          %v843 = vmul.f32 %v779, %v827
          %v844 = vsub.f32 %v684, %v748
          %v845 = vsub.f32 %v686, %v749
          %v846 = vsub.f32 %v688, %v750
          %v847 = vsub.f32 %v690, %v751
          %v848 = vsub.f32 %v692, %v752
          %v849 = vsub.f32 %v694, %v753
          %v850 = vsub.f32 %v696, %v754
          %v851 = vsub.f32 %v698, %v755
          %v852 = vsub.f32 %v700, %v756
          %v853 = vsub.f32 %v702, %v757
          %v854 = vsub.f32 %v704, %v758
          %v855 = vsub.f32 %v706, %v759
          %v856 = vsub.f32 %v708, %v760
          %v857 = vsub.f32 %v710, %v761
          %v858 = vsub.f32 %v712, %v762
          %v859 = vsub.f32 %v714, %v763
          %v860 = vpack.c.bf16 %v845, %v844
          %v861 = vpack.c.bf16 %v847, %v846
          %v862 = vpack.c.bf16 %v849, %v848
          %v863 = vpack.c.bf16 %v851, %v850
          %v864 = vpack.c.bf16 %v853, %v852
          %v865 = vpack.c.bf16 %v855, %v854
          %v866 = vpack.c.bf16 %v857, %v856
          %v867 = vpack.c.bf16 %v859, %v858
          %v869 = vmul.bf16 %v860, 1069105081
          %v870 = vpow.bf16.pop %v869
          %v872 = vmul.bf16 %v861, 1069105081
          %v873 = vpow.bf16.pop %v872
          %v875 = vmul.bf16 %v862, 1069105081
          %v876 = vpow.bf16.pop %v875
          %v878 = vmul.bf16 %v863, 1069105081
          %v879 = vpow.bf16.pop %v878
          %v881 = vmul.bf16 %v864, 1069105081
          %v882 = vpow.bf16.pop %v881
          %v884 = vmul.bf16 %v865, 1069105081
          %v885 = vpow.bf16.pop %v884
          %v887 = vmul.bf16 %v866, 1069105081
          %v888 = vpow.bf16.pop %v887
          %v890 = vmul.bf16 %v867, 1069105081
          %v891 = vpow.bf16.pop %v890
          %v892 = vunpack.c.l.bf16 %v870
          %v893 = vunpack.c.h.bf16 %v870
          %v894 = vunpack.c.l.bf16 %v873
          %v895 = vunpack.c.h.bf16 %v873
          %v896 = vunpack.c.l.bf16 %v876
          %v897 = vunpack.c.h.bf16 %v876
          %v898 = vunpack.c.l.bf16 %v879
          %v899 = vunpack.c.h.bf16 %v879
          %v900 = vunpack.c.l.bf16 %v882
          %v901 = vunpack.c.h.bf16 %v882
          %v902 = vunpack.c.l.bf16 %v885
          %v903 = vunpack.c.h.bf16 %v885
          %v904 = vunpack.c.l.bf16 %v888
          %v905 = vunpack.c.h.bf16 %v888
          %v906 = vunpack.c.l.bf16 %v891
          %v907 = vunpack.c.h.bf16 %v891
          %v908 = vadd.f32 %v828, %v892
          %v909 = vadd.f32 %v829, %v893
          %v910 = vadd.f32 %v830, %v894
          %v911 = vadd.f32 %v831, %v895
          %v912 = vadd.f32 %v832, %v896
          %v913 = vadd.f32 %v833, %v897
          %v914 = vadd.f32 %v834, %v898
          %v915 = vadd.f32 %v835, %v899
          %v916 = vadd.f32 %v836, %v900
          %v917 = vadd.f32 %v837, %v901
          %v918 = vadd.f32 %v838, %v902
          %v919 = vadd.f32 %v839, %v903
          %v920 = vadd.f32 %v840, %v904
          %v921 = vadd.f32 %v841, %v905
          %v922 = vadd.f32 %v842, %v906
          %v923 = vadd.f32 %v843, %v907
          %v924 = vsub.f32 %v685, %v748
          %v925 = vsub.f32 %v687, %v749
          %v926 = vsub.f32 %v689, %v750
          %v927 = vsub.f32 %v691, %v751
          %v928 = vsub.f32 %v693, %v752
          %v929 = vsub.f32 %v695, %v753
          %v930 = vsub.f32 %v697, %v754
          %v931 = vsub.f32 %v699, %v755
          %v932 = vsub.f32 %v701, %v756
          %v933 = vsub.f32 %v703, %v757
          %v934 = vsub.f32 %v705, %v758
          %v935 = vsub.f32 %v707, %v759
          %v936 = vsub.f32 %v709, %v760
          %v937 = vsub.f32 %v711, %v761
          %v938 = vsub.f32 %v713, %v762
          %v939 = vsub.f32 %v715, %v763
          %v940 = vpack.c.bf16 %v925, %v924
          %v941 = vpack.c.bf16 %v927, %v926
          %v942 = vpack.c.bf16 %v929, %v928
          %v943 = vpack.c.bf16 %v931, %v930
          %v944 = vpack.c.bf16 %v933, %v932
          %v945 = vpack.c.bf16 %v935, %v934
          %v946 = vpack.c.bf16 %v937, %v936
          %v947 = vpack.c.bf16 %v939, %v938
          %v949 = vmul.bf16 %v940, 1069105081
          %v950 = vpow.bf16.pop %v949
          %v952 = vmul.bf16 %v941, 1069105081
          %v953 = vpow.bf16.pop %v952
          %v955 = vmul.bf16 %v942, 1069105081
          %v956 = vpow.bf16.pop %v955
          %v958 = vmul.bf16 %v943, 1069105081
          %v959 = vpow.bf16.pop %v958
          %v961 = vmul.bf16 %v944, 1069105081
          %v962 = vpow.bf16.pop %v961
          %v964 = vmul.bf16 %v945, 1069105081
          %v965 = vpow.bf16.pop %v964
          %v967 = vmul.bf16 %v946, 1069105081
          %v968 = vpow.bf16.pop %v967
          %v970 = vmul.bf16 %v947, 1069105081
          %v971 = vpow.bf16.pop %v970
          %v972 = vunpack.c.l.bf16 %v950
          %v973 = vunpack.c.h.bf16 %v950
          %v974 = vunpack.c.l.bf16 %v953
          %v975 = vunpack.c.h.bf16 %v953
          %v976 = vunpack.c.l.bf16 %v956
          %v977 = vunpack.c.h.bf16 %v956
          %v978 = vunpack.c.l.bf16 %v959
          %v979 = vunpack.c.h.bf16 %v959
          %v980 = vunpack.c.l.bf16 %v962
          %v981 = vunpack.c.h.bf16 %v962
          %v982 = vunpack.c.l.bf16 %v965
          %v983 = vunpack.c.h.bf16 %v965
          %v984 = vunpack.c.l.bf16 %v968
          %v985 = vunpack.c.h.bf16 %v968
          %v986 = vunpack.c.l.bf16 %v971
          %v987 = vunpack.c.h.bf16 %v971
          %v988 = vadd.f32 %v908, %v972
          %v989 = vadd.f32 %v909, %v973
          %v990 = vadd.f32 %v910, %v974
          %v991 = vadd.f32 %v911, %v975
          %v992 = vadd.f32 %v912, %v976
          %v993 = vadd.f32 %v913, %v977
          %v994 = vadd.f32 %v914, %v978
          %v995 = vadd.f32 %v915, %v979
          %v996 = vadd.f32 %v916, %v980
          %v997 = vadd.f32 %v917, %v981
          %v998 = vadd.f32 %v918, %v982
          %v999 = vadd.f32 %v919, %v983
          %v1000 = vadd.f32 %v920, %v984
          %v1001 = vadd.f32 %v921, %v985
          %v1002 = vadd.f32 %v922, %v986
          %v1003 = vadd.f32 %v923, %v987
          %1004 = vst [vmem:[#allocation3] sm:$0xff] %v988
          %1005 = vst [vmem:[#allocation3 + $0x8] sm:$0xff] %v989
          %1006 = vst [vmem:[#allocation3 + $0x10] sm:$0xff] %v990
          %1007 = vst [vmem:[#allocation3 + $0x18] sm:$0xff] %v991
          %1008 = vst [vmem:[#allocation3 + $0x20] sm:$0xff] %v992
          %1009 = vst [vmem:[#allocation3 + $0x28] sm:$0xff] %v993
          %1010 = vst [vmem:[#allocation3 + $0x30] sm:$0xff] %v994
          %1011 = vst [vmem:[#allocation3 + $0x38] sm:$0xff] %v995
          %1012 = vst [vmem:[#allocation3 + $0x40] sm:$0xff] %v996
          %1013 = vst [vmem:[#allocation3 + $0x48] sm:$0xff] %v997
          %1014 = vst [vmem:[#allocation3 + $0x50] sm:$0xff] %v998
          %1015 = vst [vmem:[#allocation3 + $0x58] sm:$0xff] %v999
          %1016 = vst [vmem:[#allocation3 + $0x60] sm:$0xff] %v1000
          %1017 = vst [vmem:[#allocation3 + $0x68] sm:$0xff] %v1001
          %1018 = vst [vmem:[#allocation3 + $0x70] sm:$0xff] %v1002
          %1019 = vst [vmem:[#allocation3 + $0x78] sm:$0xff] %v1003
          %1020 = vst [vmem:[#allocation2] sm:$0xff] %v748
          %1021 = vst [vmem:[#allocation2 + $0x8] sm:$0xff] %v749
          %1022 = vst [vmem:[#allocation2 + $0x10] sm:$0xff] %v750
          %1023 = vst [vmem:[#allocation2 + $0x18] sm:$0xff] %v751
          %1024 = vst [vmem:[#allocation2 + $0x20] sm:$0xff] %v752
          %1025 = vst [vmem:[#allocation2 + $0x28] sm:$0xff] %v753
          %1026 = vst [vmem:[#allocation2 + $0x30] sm:$0xff] %v754
          %1027 = vst [vmem:[#allocation2 + $0x38] sm:$0xff] %v755
          %1028 = vst [vmem:[#allocation2 + $0x40] sm:$0xff] %v756
          %1029 = vst [vmem:[#allocation2 + $0x48] sm:$0xff] %v757
          %1030 = vst [vmem:[#allocation2 + $0x50] sm:$0xff] %v758
          %1031 = vst [vmem:[#allocation2 + $0x58] sm:$0xff] %v759
          %1032 = vst [vmem:[#allocation2 + $0x60] sm:$0xff] %v760
          %1033 = vst [vmem:[#allocation2 + $0x68] sm:$0xff] %v761
          %1034 = vst [vmem:[#allocation2 + $0x70] sm:$0xff] %v762
          %1035 = vst [vmem:[#allocation2 + $0x78] sm:$0xff] %v763
        $region48: #{tpu_custom_call.1} parent=31 // pred_fallthru
          _
        %p1036 = pneg %p609
        // Predicated region
        $region49: #{tpu_custom_call.1} parent=31 // pred_check
          _
        $region50: #{tpu_custom_call.1} parent=31 // pred_check_branch
          %1038 = sbr.rel (%p609) target = $region52
        $region51: #{tpu_custom_call.1} parent=31 // pred_region
          %v1039 = vld [vmem:[#allocation2] sm:$0xff]
          %v1040 = vld [vmem:[#allocation2 + $0x8] sm:$0xff]
          %v1041 = vld [vmem:[#allocation2 + $0x10] sm:$0xff]
          %v1042 = vld [vmem:[#allocation2 + $0x18] sm:$0xff]
          %v1043 = vld [vmem:[#allocation2 + $0x20] sm:$0xff]
          %v1044 = vld [vmem:[#allocation2 + $0x28] sm:$0xff]
          %v1045 = vld [vmem:[#allocation2 + $0x30] sm:$0xff]
          %v1046 = vld [vmem:[#allocation2 + $0x38] sm:$0xff]
          %v1047 = vld [vmem:[#allocation2 + $0x40] sm:$0xff]
          %v1048 = vld [vmem:[#allocation2 + $0x48] sm:$0xff]
          %v1049 = vld [vmem:[#allocation2 + $0x50] sm:$0xff]
          %v1050 = vld [vmem:[#allocation2 + $0x58] sm:$0xff]
          %v1051 = vld [vmem:[#allocation2 + $0x60] sm:$0xff]
          %v1052 = vld [vmem:[#allocation2 + $0x68] sm:$0xff]
          %v1053 = vld [vmem:[#allocation2 + $0x70] sm:$0xff]
          %v1054 = vld [vmem:[#allocation2 + $0x78] sm:$0xff]
          %v1055 = vmax.f32 %v524, %v526
          %v1056 = vmax.f32 %v528, %v530
          %v1057 = vmax.f32 %v534, %v536
          %v1058 = vmax.f32 %v538, %v540
          %v1059 = vmax.f32 %v544, %v546
          %v1060 = vmax.f32 %v548, %v550
          %v1061 = vmax.f32 %v554, %v556
          %v1062 = vmax.f32 %v558, %v560
          %v1063 = vmax.f32 %v564, %v566
          %v1064 = vmax.f32 %v568, %v570
          %v1065 = vmax.f32 %v574, %v576
          %v1066 = vmax.f32 %v578, %v580
          %v1067 = vmax.f32 %v584, %v586
          %v1068 = vmax.f32 %v588, %v590
          %v1069 = vmax.f32 %v594, %v596
          %v1070 = vmax.f32 %v598, %v600
          %v1071 = vmax.f32 %v1039, %v1055
          %v1072 = vmax.f32 %v1040, %v1056
          %v1073 = vmax.f32 %v1041, %v1057
          %v1074 = vmax.f32 %v1042, %v1058
          %v1075 = vmax.f32 %v1043, %v1059
          %v1076 = vmax.f32 %v1044, %v1060
          %v1077 = vmax.f32 %v1045, %v1061
          %v1078 = vmax.f32 %v1046, %v1062
          %v1079 = vmax.f32 %v1047, %v1063
          %v1080 = vmax.f32 %v1048, %v1064
          %v1081 = vmax.f32 %v1049, %v1065
          %v1082 = vmax.f32 %v1050, %v1066
          %v1083 = vmax.f32 %v1051, %v1067
          %v1084 = vmax.f32 %v1052, %v1068
          %v1085 = vmax.f32 %v1053, %v1069
          %v1086 = vmax.f32 %v1054, %v1070
          %v1087 = vld [vmem:[#allocation3] sm:$0xff]
          %v1088 = vld [vmem:[#allocation3 + $0x8] sm:$0xff]
          %v1089 = vld [vmem:[#allocation3 + $0x10] sm:$0xff]
          %v1090 = vld [vmem:[#allocation3 + $0x18] sm:$0xff]
          %v1091 = vld [vmem:[#allocation3 + $0x20] sm:$0xff]
          %v1092 = vld [vmem:[#allocation3 + $0x28] sm:$0xff]
          %v1093 = vld [vmem:[#allocation3 + $0x30] sm:$0xff]
          %v1094 = vld [vmem:[#allocation3 + $0x38] sm:$0xff]
          %v1095 = vld [vmem:[#allocation3 + $0x40] sm:$0xff]
          %v1096 = vld [vmem:[#allocation3 + $0x48] sm:$0xff]
          %v1097 = vld [vmem:[#allocation3 + $0x50] sm:$0xff]
          %v1098 = vld [vmem:[#allocation3 + $0x58] sm:$0xff]
          %v1099 = vld [vmem:[#allocation3 + $0x60] sm:$0xff]
          %v1100 = vld [vmem:[#allocation3 + $0x68] sm:$0xff]
          %v1101 = vld [vmem:[#allocation3 + $0x70] sm:$0xff]
          %v1102 = vld [vmem:[#allocation3 + $0x78] sm:$0xff]
          %v1103 = vsub.f32 %v1039, %v1071
          %v1104 = vsub.f32 %v1040, %v1072
          %v1105 = vsub.f32 %v1041, %v1073
          %v1106 = vsub.f32 %v1042, %v1074
          %v1107 = vsub.f32 %v1043, %v1075
          %v1108 = vsub.f32 %v1044, %v1076
          %v1109 = vsub.f32 %v1045, %v1077
          %v1110 = vsub.f32 %v1046, %v1078
          %v1111 = vsub.f32 %v1047, %v1079
          %v1112 = vsub.f32 %v1048, %v1080
          %v1113 = vsub.f32 %v1049, %v1081
          %v1114 = vsub.f32 %v1050, %v1082
          %v1115 = vsub.f32 %v1051, %v1083
          %v1116 = vsub.f32 %v1052, %v1084
          %v1117 = vsub.f32 %v1053, %v1085
          %v1118 = vsub.f32 %v1054, %v1086
          %v1119 = vmul.f32 %v1103, 1.442695
          %v1120 = vpow.pop %v1119
          %v1121 = vmul.f32 %v1104, 1.442695
          %v1122 = vpow.pop %v1121
          %v1123 = vmul.f32 %v1105, 1.442695
          %v1124 = vpow.pop %v1123
          %v1125 = vmul.f32 %v1106, 1.442695
          %v1126 = vpow.pop %v1125
          %v1127 = vmul.f32 %v1107, 1.442695
          %v1128 = vpow.pop %v1127
          %v1129 = vmul.f32 %v1108, 1.442695
          %v1130 = vpow.pop %v1129
          %v1131 = vmul.f32 %v1109, 1.442695
          %v1132 = vpow.pop %v1131
          %v1133 = vmul.f32 %v1110, 1.442695
          %v1134 = vpow.pop %v1133
          %v1135 = vmul.f32 %v1111, 1.442695
          %v1136 = vpow.pop %v1135
          %v1137 = vmul.f32 %v1112, 1.442695
          %v1138 = vpow.pop %v1137
          %v1139 = vmul.f32 %v1113, 1.442695
          %v1140 = vpow.pop %v1139
          %v1141 = vmul.f32 %v1114, 1.442695
          %v1142 = vpow.pop %v1141
          %v1143 = vmul.f32 %v1115, 1.442695
          %v1144 = vpow.pop %v1143
          %v1145 = vmul.f32 %v1116, 1.442695
          %v1146 = vpow.pop %v1145
          %v1147 = vmul.f32 %v1117, 1.442695
          %v1148 = vpow.pop %v1147
          %v1149 = vmul.f32 %v1118, 1.442695
          %v1150 = vpow.pop %v1149
          %v1151 = vmul.f32 %v1087, %v1120
          %v1152 = vmul.f32 %v1088, %v1122
          %v1153 = vmul.f32 %v1089, %v1124
          %v1154 = vmul.f32 %v1090, %v1126
          %v1155 = vmul.f32 %v1091, %v1128
          %v1156 = vmul.f32 %v1092, %v1130
          %v1157 = vmul.f32 %v1093, %v1132
          %v1158 = vmul.f32 %v1094, %v1134
          %v1159 = vmul.f32 %v1095, %v1136
          %v1160 = vmul.f32 %v1096, %v1138
          %v1161 = vmul.f32 %v1097, %v1140
          %v1162 = vmul.f32 %v1098, %v1142
          %v1163 = vmul.f32 %v1099, %v1144
          %v1164 = vmul.f32 %v1100, %v1146
          %v1165 = vmul.f32 %v1101, %v1148
          %v1166 = vmul.f32 %v1102, %v1150
          %v1167 = vsub.f32 %v524, %v1071
          %v1168 = vsub.f32 %v528, %v1072
          %v1169 = vsub.f32 %v534, %v1073
          %v1170 = vsub.f32 %v538, %v1074
          %v1171 = vsub.f32 %v544, %v1075
          %v1172 = vsub.f32 %v548, %v1076
          %v1173 = vsub.f32 %v554, %v1077
          %v1174 = vsub.f32 %v558, %v1078
          %v1175 = vsub.f32 %v564, %v1079
          %v1176 = vsub.f32 %v568, %v1080
          %v1177 = vsub.f32 %v574, %v1081
          %v1178 = vsub.f32 %v578, %v1082
          %v1179 = vsub.f32 %v584, %v1083
          %v1180 = vsub.f32 %v588, %v1084
          %v1181 = vsub.f32 %v594, %v1085
          %v1182 = vsub.f32 %v598, %v1086
          %v1183 = vpack.c.bf16 %v1168, %v1167
          %v1184 = vpack.c.bf16 %v1170, %v1169
          %v1185 = vpack.c.bf16 %v1172, %v1171
          %v1186 = vpack.c.bf16 %v1174, %v1173
          %v1187 = vpack.c.bf16 %v1176, %v1175
          %v1188 = vpack.c.bf16 %v1178, %v1177
          %v1189 = vpack.c.bf16 %v1180, %v1179
          %v1190 = vpack.c.bf16 %v1182, %v1181
          %v1192 = vmul.bf16 %v1183, 1069105081
          %v1193 = vpow.bf16.pop %v1192
          %v1195 = vmul.bf16 %v1184, 1069105081
          %v1196 = vpow.bf16.pop %v1195
          %v1198 = vmul.bf16 %v1185, 1069105081
          %v1199 = vpow.bf16.pop %v1198
          %v1201 = vmul.bf16 %v1186, 1069105081
          %v1202 = vpow.bf16.pop %v1201
          %v1204 = vmul.bf16 %v1187, 1069105081
          %v1205 = vpow.bf16.pop %v1204
          %v1207 = vmul.bf16 %v1188, 1069105081
          %v1208 = vpow.bf16.pop %v1207
          %v1210 = vmul.bf16 %v1189, 1069105081
          %v1211 = vpow.bf16.pop %v1210
          %v1213 = vmul.bf16 %v1190, 1069105081
          %v1214 = vpow.bf16.pop %v1213
          %v1215 = vunpack.c.l.bf16 %v1193
          %v1216 = vunpack.c.h.bf16 %v1193
          %v1217 = vunpack.c.l.bf16 %v1196
          %v1218 = vunpack.c.h.bf16 %v1196
          %v1219 = vunpack.c.l.bf16 %v1199
          %v1220 = vunpack.c.h.bf16 %v1199
          %v1221 = vunpack.c.l.bf16 %v1202
          %v1222 = vunpack.c.h.bf16 %v1202
          %v1223 = vunpack.c.l.bf16 %v1205
          %v1224 = vunpack.c.h.bf16 %v1205
          %v1225 = vunpack.c.l.bf16 %v1208
          %v1226 = vunpack.c.h.bf16 %v1208
          %v1227 = vunpack.c.l.bf16 %v1211
          %v1228 = vunpack.c.h.bf16 %v1211
          %v1229 = vunpack.c.l.bf16 %v1214
          %v1230 = vunpack.c.h.bf16 %v1214
          %v1231 = vadd.f32 %v1151, %v1215
          %v1232 = vadd.f32 %v1152, %v1216
          %v1233 = vadd.f32 %v1153, %v1217
          %v1234 = vadd.f32 %v1154, %v1218
          %v1235 = vadd.f32 %v1155, %v1219
          %v1236 = vadd.f32 %v1156, %v1220
          %v1237 = vadd.f32 %v1157, %v1221
          %v1238 = vadd.f32 %v1158, %v1222
          %v1239 = vadd.f32 %v1159, %v1223
          %v1240 = vadd.f32 %v1160, %v1224
          %v1241 = vadd.f32 %v1161, %v1225
          %v1242 = vadd.f32 %v1162, %v1226
          %v1243 = vadd.f32 %v1163, %v1227
          %v1244 = vadd.f32 %v1164, %v1228
          %v1245 = vadd.f32 %v1165, %v1229
          %v1246 = vadd.f32 %v1166, %v1230
          %v1247 = vsub.f32 %v526, %v1071
          %v1248 = vsub.f32 %v530, %v1072
          %v1249 = vsub.f32 %v536, %v1073
          %v1250 = vsub.f32 %v540, %v1074
          %v1251 = vsub.f32 %v546, %v1075
          %v1252 = vsub.f32 %v550, %v1076
          %v1253 = vsub.f32 %v556, %v1077
          %v1254 = vsub.f32 %v560, %v1078
          %v1255 = vsub.f32 %v566, %v1079
          %v1256 = vsub.f32 %v570, %v1080
          %v1257 = vsub.f32 %v576, %v1081
          %v1258 = vsub.f32 %v580, %v1082
          %v1259 = vsub.f32 %v586, %v1083
          %v1260 = vsub.f32 %v590, %v1084
          %v1261 = vsub.f32 %v596, %v1085
          %v1262 = vsub.f32 %v600, %v1086
          %v1263 = vpack.c.bf16 %v1248, %v1247
          %v1264 = vpack.c.bf16 %v1250, %v1249
          %v1265 = vpack.c.bf16 %v1252, %v1251
          %v1266 = vpack.c.bf16 %v1254, %v1253
          %v1267 = vpack.c.bf16 %v1256, %v1255
          %v1268 = vpack.c.bf16 %v1258, %v1257
          %v1269 = vpack.c.bf16 %v1260, %v1259
          %v1270 = vpack.c.bf16 %v1262, %v1261
          %v1272 = vmul.bf16 %v1263, 1069105081
          %v1273 = vpow.bf16.pop %v1272
          %v1275 = vmul.bf16 %v1264, 1069105081
          %v1276 = vpow.bf16.pop %v1275
          %v1278 = vmul.bf16 %v1265, 1069105081
          %v1279 = vpow.bf16.pop %v1278
          %v1281 = vmul.bf16 %v1266, 1069105081
          %v1282 = vpow.bf16.pop %v1281
          %v1284 = vmul.bf16 %v1267, 1069105081
          %v1285 = vpow.bf16.pop %v1284
          %v1287 = vmul.bf16 %v1268, 1069105081
          %v1288 = vpow.bf16.pop %v1287
          %v1290 = vmul.bf16 %v1269, 1069105081
          %v1291 = vpow.bf16.pop %v1290
          %v1293 = vmul.bf16 %v1270, 1069105081
          %v1294 = vpow.bf16.pop %v1293
          %v1295 = vunpack.c.l.bf16 %v1273
          %v1296 = vunpack.c.h.bf16 %v1273
          %v1297 = vunpack.c.l.bf16 %v1276
          %v1298 = vunpack.c.h.bf16 %v1276
          %v1299 = vunpack.c.l.bf16 %v1279
          %v1300 = vunpack.c.h.bf16 %v1279
          %v1301 = vunpack.c.l.bf16 %v1282
          %v1302 = vunpack.c.h.bf16 %v1282
          %v1303 = vunpack.c.l.bf16 %v1285
          %v1304 = vunpack.c.h.bf16 %v1285
          %v1305 = vunpack.c.l.bf16 %v1288
          %v1306 = vunpack.c.h.bf16 %v1288
          %v1307 = vunpack.c.l.bf16 %v1291
          %v1308 = vunpack.c.h.bf16 %v1291
          %v1309 = vunpack.c.l.bf16 %v1294
          %v1310 = vunpack.c.h.bf16 %v1294
          %v1311 = vadd.f32 %v1231, %v1295
          %v1312 = vadd.f32 %v1232, %v1296
          %v1313 = vadd.f32 %v1233, %v1297
          %v1314 = vadd.f32 %v1234, %v1298
          %v1315 = vadd.f32 %v1235, %v1299
          %v1316 = vadd.f32 %v1236, %v1300
          %v1317 = vadd.f32 %v1237, %v1301
          %v1318 = vadd.f32 %v1238, %v1302
          %v1319 = vadd.f32 %v1239, %v1303
          %v1320 = vadd.f32 %v1240, %v1304
          %v1321 = vadd.f32 %v1241, %v1305
          %v1322 = vadd.f32 %v1242, %v1306
          %v1323 = vadd.f32 %v1243, %v1307
          %v1324 = vadd.f32 %v1244, %v1308
          %v1325 = vadd.f32 %v1245, %v1309
          %v1326 = vadd.f32 %v1246, %v1310
          %1327 = vst [vmem:[#allocation3] sm:$0xff] %v1311
          %1328 = vst [vmem:[#allocation3 + $0x8] sm:$0xff] %v1312
          %1329 = vst [vmem:[#allocation3 + $0x10] sm:$0xff] %v1313
          %1330 = vst [vmem:[#allocation3 + $0x18] sm:$0xff] %v1314
          %1331 = vst [vmem:[#allocation3 + $0x20] sm:$0xff] %v1315
          %1332 = vst [vmem:[#allocation3 + $0x28] sm:$0xff] %v1316
          %1333 = vst [vmem:[#allocation3 + $0x30] sm:$0xff] %v1317
          %1334 = vst [vmem:[#allocation3 + $0x38] sm:$0xff] %v1318
          %1335 = vst [vmem:[#allocation3 + $0x40] sm:$0xff] %v1319
          %1336 = vst [vmem:[#allocation3 + $0x48] sm:$0xff] %v1320
          %1337 = vst [vmem:[#allocation3 + $0x50] sm:$0xff] %v1321
          %1338 = vst [vmem:[#allocation3 + $0x58] sm:$0xff] %v1322
          %1339 = vst [vmem:[#allocation3 + $0x60] sm:$0xff] %v1323
          %1340 = vst [vmem:[#allocation3 + $0x68] sm:$0xff] %v1324
          %1341 = vst [vmem:[#allocation3 + $0x70] sm:$0xff] %v1325
          %1342 = vst [vmem:[#allocation3 + $0x78] sm:$0xff] %v1326
          %1343 = vst [vmem:[#allocation2] sm:$0xff] %v1071
          %1344 = vst [vmem:[#allocation2 + $0x8] sm:$0xff] %v1072
          %1345 = vst [vmem:[#allocation2 + $0x10] sm:$0xff] %v1073
          %1346 = vst [vmem:[#allocation2 + $0x18] sm:$0xff] %v1074
          %1347 = vst [vmem:[#allocation2 + $0x20] sm:$0xff] %v1075
          %1348 = vst [vmem:[#allocation2 + $0x28] sm:$0xff] %v1076
          %1349 = vst [vmem:[#allocation2 + $0x30] sm:$0xff] %v1077
          %1350 = vst [vmem:[#allocation2 + $0x38] sm:$0xff] %v1078
          %1351 = vst [vmem:[#allocation2 + $0x40] sm:$0xff] %v1079
          %1352 = vst [vmem:[#allocation2 + $0x48] sm:$0xff] %v1080
          %1353 = vst [vmem:[#allocation2 + $0x50] sm:$0xff] %v1081
          %1354 = vst [vmem:[#allocation2 + $0x58] sm:$0xff] %v1082
          %1355 = vst [vmem:[#allocation2 + $0x60] sm:$0xff] %v1083
          %1356 = vst [vmem:[#allocation2 + $0x68] sm:$0xff] %v1084
          %1357 = vst [vmem:[#allocation2 + $0x70] sm:$0xff] %v1085
          %1358 = vst [vmem:[#allocation2 + $0x78] sm:$0xff] %v1086
        $region52: #{tpu_custom_call.1} parent=31 // pred_fallthru
          _
        // Predicated region
        $region53: #{tpu_custom_call.1} parent=31 // pred_check
          %p1359 = pneg %p249
        $region54: #{tpu_custom_call.1} parent=31 // pred_check_branch
          %1361 = sbr.rel (%p1359) target = $region56
        $region55: #{tpu_custom_call.1} parent=31 // pred_region
          %v1362 = vld [vmem:[#allocation2] sm:$0xff]
          %v1363 = vld [vmem:[#allocation2 + $0x8] sm:$0xff]
          %v1364 = vld [vmem:[#allocation2 + $0x10] sm:$0xff]
          %v1365 = vld [vmem:[#allocation2 + $0x18] sm:$0xff]
          %v1366 = vld [vmem:[#allocation2 + $0x20] sm:$0xff]
          %v1367 = vld [vmem:[#allocation2 + $0x28] sm:$0xff]
          %v1368 = vld [vmem:[#allocation2 + $0x30] sm:$0xff]
          %v1369 = vld [vmem:[#allocation2 + $0x38] sm:$0xff]
          %v1370 = vld [vmem:[#allocation2 + $0x40] sm:$0xff]
          %v1371 = vld [vmem:[#allocation2 + $0x48] sm:$0xff]
          %v1372 = vld [vmem:[#allocation2 + $0x50] sm:$0xff]
          %v1373 = vld [vmem:[#allocation2 + $0x58] sm:$0xff]
          %v1374 = vld [vmem:[#allocation2 + $0x60] sm:$0xff]
          %v1375 = vld [vmem:[#allocation2 + $0x68] sm:$0xff]
          %v1376 = vld [vmem:[#allocation2 + $0x70] sm:$0xff]
          %v1377 = vld [vmem:[#allocation2 + $0x78] sm:$0xff]
          %v1378 = vld [vmem:[#allocation3] sm:$0xff]
          %v1379 = vld [vmem:[#allocation3 + $0x8] sm:$0xff]
          %v1380 = vld [vmem:[#allocation3 + $0x10] sm:$0xff]
          %v1381 = vld [vmem:[#allocation3 + $0x18] sm:$0xff]
          %v1382 = vld [vmem:[#allocation3 + $0x20] sm:$0xff]
          %v1383 = vld [vmem:[#allocation3 + $0x28] sm:$0xff]
          %v1384 = vld [vmem:[#allocation3 + $0x30] sm:$0xff]
          %v1385 = vld [vmem:[#allocation3 + $0x38] sm:$0xff]
          %v1386 = vld [vmem:[#allocation3 + $0x40] sm:$0xff]
          %v1387 = vld [vmem:[#allocation3 + $0x48] sm:$0xff]
          %v1388 = vld [vmem:[#allocation3 + $0x50] sm:$0xff]
          %v1389 = vld [vmem:[#allocation3 + $0x58] sm:$0xff]
          %v1390 = vld [vmem:[#allocation3 + $0x60] sm:$0xff]
          %v1391 = vld [vmem:[#allocation3 + $0x68] sm:$0xff]
          %v1392 = vld [vmem:[#allocation3 + $0x70] sm:$0xff]
          %v1393 = vld [vmem:[#allocation3 + $0x78] sm:$0xff]
          %1394 = vmax.xlane.f32.xlu0 %v1362
          %v1395 = vpop.xlane.xlu0 %1394
          %1396 = vmax.xlane.f32.xlu0 %v1363
          %v1397 = vpop.xlane.xlu0 %1396
          %1398 = vmax.xlane.f32.xlu0 %v1364
          %v1399 = vpop.xlane.xlu0 %1398
          %1400 = vmax.xlane.f32.xlu0 %v1365
          %v1401 = vpop.xlane.xlu0 %1400
          %1402 = vmax.xlane.f32.xlu0 %v1366
          %v1403 = vpop.xlane.xlu0 %1402
          %1404 = vmax.xlane.f32.xlu0 %v1367
          %v1405 = vpop.xlane.xlu0 %1404
          %1406 = vmax.xlane.f32.xlu0 %v1368
          %v1407 = vpop.xlane.xlu0 %1406
          %1408 = vmax.xlane.f32.xlu0 %v1369
          %v1409 = vpop.xlane.xlu0 %1408
          %1410 = vmax.xlane.f32.xlu0 %v1370
          %v1411 = vpop.xlane.xlu0 %1410
          %1412 = vmax.xlane.f32.xlu0 %v1371
          %v1413 = vpop.xlane.xlu0 %1412
          %1414 = vmax.xlane.f32.xlu0 %v1372
          %v1415 = vpop.xlane.xlu0 %1414
          %1416 = vmax.xlane.f32.xlu0 %v1373
          %v1417 = vpop.xlane.xlu0 %1416
          %1418 = vmax.xlane.f32.xlu0 %v1374
          %v1419 = vpop.xlane.xlu0 %1418
          %1420 = vmax.xlane.f32.xlu0 %v1375
          %v1421 = vpop.xlane.xlu0 %1420
          %1422 = vmax.xlane.f32.xlu0 %v1376
          %v1423 = vpop.xlane.xlu0 %1422
          %1424 = vmax.xlane.f32.xlu0 %v1377
          %v1425 = vpop.xlane.xlu0 %1424
          %v1426 = vsub.f32 %v1362, %v1395
          %v1427 = vsub.f32 %v1363, %v1397
          %v1428 = vsub.f32 %v1364, %v1399
          %v1429 = vsub.f32 %v1365, %v1401
          %v1430 = vsub.f32 %v1366, %v1403
          %v1431 = vsub.f32 %v1367, %v1405
          %v1432 = vsub.f32 %v1368, %v1407
          %v1433 = vsub.f32 %v1369, %v1409
          %v1434 = vsub.f32 %v1370, %v1411
          %v1435 = vsub.f32 %v1371, %v1413
          %v1436 = vsub.f32 %v1372, %v1415
          %v1437 = vsub.f32 %v1373, %v1417
          %v1438 = vsub.f32 %v1374, %v1419
          %v1439 = vsub.f32 %v1375, %v1421
          %v1440 = vsub.f32 %v1376, %v1423
          %v1441 = vsub.f32 %v1377, %v1425
          %v1442 = vmul.f32 %v1426, 1.442695
          %v1443 = vpow.pop %v1442
          %v1444 = vmul.f32 %v1427, 1.442695
          %v1445 = vpow.pop %v1444
          %v1446 = vmul.f32 %v1428, 1.442695
          %v1447 = vpow.pop %v1446
          %v1448 = vmul.f32 %v1429, 1.442695
          %v1449 = vpow.pop %v1448
          %v1450 = vmul.f32 %v1430, 1.442695
          %v1451 = vpow.pop %v1450
          %v1452 = vmul.f32 %v1431, 1.442695
          %v1453 = vpow.pop %v1452
          %v1454 = vmul.f32 %v1432, 1.442695
          %v1455 = vpow.pop %v1454
          %v1456 = vmul.f32 %v1433, 1.442695
          %v1457 = vpow.pop %v1456
          %v1458 = vmul.f32 %v1434, 1.442695
          %v1459 = vpow.pop %v1458
          %v1460 = vmul.f32 %v1435, 1.442695
          %v1461 = vpow.pop %v1460
          %v1462 = vmul.f32 %v1436, 1.442695
          %v1463 = vpow.pop %v1462
          %v1464 = vmul.f32 %v1437, 1.442695
          %v1465 = vpow.pop %v1464
          %v1466 = vmul.f32 %v1438, 1.442695
          %v1467 = vpow.pop %v1466
          %v1468 = vmul.f32 %v1439, 1.442695
          %v1469 = vpow.pop %v1468
          %v1470 = vmul.f32 %v1440, 1.442695
          %v1471 = vpow.pop %v1470
          %v1472 = vmul.f32 %v1441, 1.442695
          %v1473 = vpow.pop %v1472
          %v1474 = vmul.f32 %v1443, %v1378
          %v1475 = vmul.f32 %v1445, %v1379
          %v1476 = vmul.f32 %v1447, %v1380
          %v1477 = vmul.f32 %v1449, %v1381
          %v1478 = vmul.f32 %v1451, %v1382
          %v1479 = vmul.f32 %v1453, %v1383
          %v1480 = vmul.f32 %v1455, %v1384
          %v1481 = vmul.f32 %v1457, %v1385
          %v1482 = vmul.f32 %v1459, %v1386
          %v1483 = vmul.f32 %v1461, %v1387
          %v1484 = vmul.f32 %v1463, %v1388
          %v1485 = vmul.f32 %v1465, %v1389
          %v1486 = vmul.f32 %v1467, %v1390
          %v1487 = vmul.f32 %v1469, %v1391
          %v1488 = vmul.f32 %v1471, %v1392
          %v1489 = vmul.f32 %v1473, %v1393
          %1490 = vadd.xlane.f32.xlu0 %v1474
          %v1491 = vpop.xlane.xlu0 %1490
          %1492 = vadd.xlane.f32.xlu0 %v1475
          %v1493 = vpop.xlane.xlu0 %1492
          %1494 = vadd.xlane.f32.xlu0 %v1476
          %v1495 = vpop.xlane.xlu0 %1494
          %1496 = vadd.xlane.f32.xlu0 %v1477
          %v1497 = vpop.xlane.xlu0 %1496
          %1498 = vadd.xlane.f32.xlu0 %v1478
          %v1499 = vpop.xlane.xlu0 %1498
          %1500 = vadd.xlane.f32.xlu0 %v1479
          %v1501 = vpop.xlane.xlu0 %1500
          %1502 = vadd.xlane.f32.xlu0 %v1480
          %v1503 = vpop.xlane.xlu0 %1502
          %1504 = vadd.xlane.f32.xlu0 %v1481
          %v1505 = vpop.xlane.xlu0 %1504
          %1506 = vadd.xlane.f32.xlu0 %v1482
          %v1507 = vpop.xlane.xlu0 %1506
          %1508 = vadd.xlane.f32.xlu0 %v1483
          %v1509 = vpop.xlane.xlu0 %1508
          %1510 = vadd.xlane.f32.xlu0 %v1484
          %v1511 = vpop.xlane.xlu0 %1510
          %1512 = vadd.xlane.f32.xlu0 %v1485
          %v1513 = vpop.xlane.xlu0 %1512
          %1514 = vadd.xlane.f32.xlu0 %v1486
          %v1515 = vpop.xlane.xlu0 %1514
          %1516 = vadd.xlane.f32.xlu0 %v1487
          %v1517 = vpop.xlane.xlu0 %1516
          %1518 = vadd.xlane.f32.xlu0 %v1488
          %v1519 = vpop.xlane.xlu0 %1518
          %1520 = vadd.xlane.f32.xlu0 %v1489
          %v1521 = vpop.xlane.xlu0 %1520
          %v1522 = vlog2.pop %v1491
          %v1523 = vmul.f32 %v1522, 0.6931472
          %v1524 = vlog2.pop %v1493
          %v1525 = vmul.f32 %v1524, 0.6931472
          %v1526 = vlog2.pop %v1495
          %v1527 = vmul.f32 %v1526, 0.6931472
          %v1528 = vlog2.pop %v1497
          %v1529 = vmul.f32 %v1528, 0.6931472
          %v1530 = vlog2.pop %v1499
          %v1531 = vmul.f32 %v1530, 0.6931472
          %v1532 = vlog2.pop %v1501
          %v1533 = vmul.f32 %v1532, 0.6931472
          %v1534 = vlog2.pop %v1503
          %v1535 = vmul.f32 %v1534, 0.6931472
          %v1536 = vlog2.pop %v1505
          %v1537 = vmul.f32 %v1536, 0.6931472
          %v1538 = vlog2.pop %v1507
          %v1539 = vmul.f32 %v1538, 0.6931472
          %v1540 = vlog2.pop %v1509
          %v1541 = vmul.f32 %v1540, 0.6931472
          %v1542 = vlog2.pop %v1511
          %v1543 = vmul.f32 %v1542, 0.6931472
          %v1544 = vlog2.pop %v1513
          %v1545 = vmul.f32 %v1544, 0.6931472
          %v1546 = vlog2.pop %v1515
          %v1547 = vmul.f32 %v1546, 0.6931472
          %v1548 = vlog2.pop %v1517
          %v1549 = vmul.f32 %v1548, 0.6931472
          %v1550 = vlog2.pop %v1519
          %v1551 = vmul.f32 %v1550, 0.6931472
          %v1552 = vlog2.pop %v1521
          %v1553 = vmul.f32 %v1552, 0.6931472
          %v1554 = vadd.f32 %v1395, %v1523
          %v1555 = vadd.f32 %v1397, %v1525
          %v1556 = vadd.f32 %v1399, %v1527
          %v1557 = vadd.f32 %v1401, %v1529
          %v1558 = vadd.f32 %v1403, %v1531
          %v1559 = vadd.f32 %v1405, %v1533
          %v1560 = vadd.f32 %v1407, %v1535
          %v1561 = vadd.f32 %v1409, %v1537
          %v1562 = vadd.f32 %v1411, %v1539
          %v1563 = vadd.f32 %v1413, %v1541
          %v1564 = vadd.f32 %v1415, %v1543
          %v1565 = vadd.f32 %v1417, %v1545
          %v1566 = vadd.f32 %v1419, %v1547
          %v1567 = vadd.f32 %v1421, %v1549
          %v1568 = vadd.f32 %v1423, %v1551
          %v1569 = vadd.f32 %v1425, %v1553
          %vm1570 = vcmask 7168
          %1571 = vst.msk [vmem:[%s246] sm:$0xff] %vm1570, %v1554
          %1572 = vst.msk [vmem:[%s246 + $0x8] sm:$0xff] %vm1570, %v1555
          %1573 = vst.msk [vmem:[%s246 + $0x10] sm:$0xff] %vm1570, %v1556
          %1574 = vst.msk [vmem:[%s246 + $0x18] sm:$0xff] %vm1570, %v1557
          %1575 = vst.msk [vmem:[%s246 + $0x20] sm:$0xff] %vm1570, %v1558
          %1576 = vst.msk [vmem:[%s246 + $0x28] sm:$0xff] %vm1570, %v1559
          %1577 = vst.msk [vmem:[%s246 + $0x30] sm:$0xff] %vm1570, %v1560
          %1578 = vst.msk [vmem:[%s246 + $0x38] sm:$0xff] %vm1570, %v1561
          %1579 = vst.msk [vmem:[%s246 + $0x40] sm:$0xff] %vm1570, %v1562
          %1580 = vst.msk [vmem:[%s246 + $0x48] sm:$0xff] %vm1570, %v1563
          %1581 = vst.msk [vmem:[%s246 + $0x50] sm:$0xff] %vm1570, %v1564
          %1582 = vst.msk [vmem:[%s246 + $0x58] sm:$0xff] %vm1570, %v1565
          %1583 = vst.msk [vmem:[%s246 + $0x60] sm:$0xff] %vm1570, %v1566
          %1584 = vst.msk [vmem:[%s246 + $0x68] sm:$0xff] %vm1570, %v1567
          %1585 = vst.msk [vmem:[%s246 + $0x70] sm:$0xff] %vm1570, %v1568
          %1586 = vst.msk [vmem:[%s246 + $0x78] sm:$0xff] %vm1570, %v1569
        $region56: #{tpu_custom_call.1} parent=31 // pred_fallthru
          _
        %s1587 = smul.u32 16, %s22
        %p1588 = scmp.lt.s32.totalorder %s1587, 31
        %s1589 = scalar_select %p1588, %s1587, 31
        %s1590 = smul.addr %s1589, 8
        %s1591 = scalar_lea.vmem %s3, %s1590
        // Predicated region
        $region57: #{tpu_custom_call.1} parent=31 // pred_check
          %p1592 = pneg %p126
        $region58: #{tpu_custom_call.1} parent=31 // pred_check_branch
          %1594 = sbr.rel (%p1592) target = $region60
        $region59: #{tpu_custom_call.1} parent=31 // pred_region
          %s1595 = smul.u32 16, %s22
        $region60: #{tpu_custom_call.1} parent=31 // pred_fallthru
          _
      $region32: #{tpu_custom_call.1} parent=5 // pred_fallthru
        _
      %p1596 = scmp.le.s32.totalorder 2, %s13
      // Predicated region
      $region61: #{tpu_custom_call.1} parent=5 // pred_check
        %p1597 = pneg %p1596
      $region62: #{tpu_custom_call.1} parent=5 // pred_check_branch
        %1599 = sbr.rel (%p1597) target = $region64
      $region63: #{tpu_custom_call.1} parent=5 // pred_region
        %s1600 = ssub.s32 %s13, 2
        // Predicated region
        $region65: #{tpu_custom_call.1} parent=63 // pred_check
          %p1601 = pneg %p132
        $region66: #{tpu_custom_call.1} parent=63 // pred_check_branch
          %1603 = sbr.rel (%p1601) target = $region68
        $region67: #{tpu_custom_call.1} parent=63 // pred_region
          %s1604 = smul.u32 16, %s24
          %p1605 = scmp.lt.s32.totalorder %s1604, 31
          %s1606 = scalar_select %p1605, %s1604, 31
          %s1607 = smul.addr %s1606, 8
          %s1608 = scalar_lea.vmem %s3, %s1607
        $region68: #{tpu_custom_call.1} parent=63 // pred_fallthru
          _
      $region64: #{tpu_custom_call.1} parent=5 // pred_fallthru
        _
    $region6: #{tpu_custom_call.1} parent=1 // loop_footer
      %s17 = sadd.s32 1, %s13
    $region7: #{tpu_custom_call.1} parent=1 // loop_footer_branch
      %12 = sbr.rel target = $region3
    $region8: #{tpu_custom_call.1} parent=1 // loop_exit
      _
    %1609 = vsyncpa [#allocation5], 1
    %s1610 = scalar_lea.sflag [#allocation5], 1
    %1611 = vsyncpa %s1610, 1
    %1612 = vsyncpa [#allocation7], 1

</llo_original>
